<compile_context>
chip_gen: v6e
topology: v6e:2x2x1
jax: 0.10.0
libtpu: 0.0.40
codegen_flags: <defaults>
</compile_context>

<pallas_src>
import math

import jax
import jax.numpy as jnp
from jax.experimental import pallas as pl
from jax.experimental.pallas import tpu as pltpu

# ---------------- config ----------------
BATCH = 2
SEQ = 8
HIDDEN = 32
HEAD_NUM = 4
HEAD_DIM = HIDDEN // HEAD_NUM
DROPOUT_RATE = 0.1  # eval-mode dropout == identity


def mha_kernel(x_ref, wqkv_ref, bqkv_ref, wo_ref, bo_ref, o_ref):
    # x_ref:    (B*S, H)        f32
    # wqkv_ref: (H, 3H)         bf16   (Wq | Wk | Wv)
    # bqkv_ref: (1, 3H)         f32
    # wo_ref:   (HN, HD, H)     bf16   (output projection, split per head)
    # bo_ref:   (1, H)          f32
    # o_ref:    (B*S, H)        f32
    n = BATCH * SEQ

    x = x_ref[...].astype(jnp.bfloat16)

    # Fused Q|K|V projection: one MXU push, f32 accumulation, one bias add.
    qkv = jnp.dot(x, wqkv_ref[...], preferred_element_type=jnp.float32)
    qkv = qkv + bqkv_ref[...]                                   # (N, 3H) f32

    scale = 1.0 / math.sqrt(HEAD_DIM)
    acc = jnp.zeros((n, HIDDEN), dtype=jnp.float32)

    for h in range(HEAD_NUM):                                   # static unroll
        c = h * HEAD_DIM
        qh = qkv[:, c:c + HEAD_DIM].reshape(BATCH, SEQ, HEAD_DIM)
        kh = qkv[:, HIDDEN + c:HIDDEN + c + HEAD_DIM].reshape(BATCH, SEQ, HEAD_DIM)
        vh = qkv[:, 2 * HIDDEN + c:2 * HIDDEN + c + HEAD_DIM].reshape(BATCH, SEQ, HEAD_DIM)

        # scores = Qh @ Kh^T / sqrt(hd), batched over the batch axis
        s = jnp.einsum(
            "bqd,bkd->bqk",
            qh.astype(jnp.bfloat16), kh.astype(jnp.bfloat16),
            preferred_element_type=jnp.float32) * scale         # (B, S, S)

        # softmax over keys (max-subtracted; divide via EUP approx reciprocal)
        m = jnp.max(s, axis=-1, keepdims=True)
        e = jnp.exp(s - m)
        denom = jnp.sum(e, axis=-1, keepdims=True)
        p = e * pl.reciprocal(denom, approx=True)

        # attention output for this head
        attn = jnp.einsum(
            "bqk,bkd->bqd",
            p.astype(jnp.bfloat16), vh.astype(jnp.bfloat16),
            preferred_element_type=jnp.float32)                 # (B, S, HD)

        # fold directly into the output projection: out += attn_h @ Wo_h
        acc = acc + jnp.dot(
            attn.reshape(n, HEAD_DIM).astype(jnp.bfloat16), wo_ref[h],
            preferred_element_type=jnp.float32)

    o_ref[...] = (acc + bo_ref[...]).astype(o_ref.dtype)


def multi_head_self_attention(x, wq, bq, wk, bk, wv, bv, wo, bo):
    B, S, H = x.shape
    n = B * S
    x2 = x.reshape(n, H)

    # Fuse Q|K|V weights / biases (wrapper-side, free in XLA).
    wqkv = jnp.concatenate([wq, wk, wv], axis=1).astype(jnp.bfloat16)   # (H, 3H)
    bqkv = jnp.concatenate([bq, bk, bv]).reshape(1, 3 * H)              # (1, 3H)

    # Pre-split the output projection per head so the kernel never needs a
    # lane-axis concatenate: out = sum_h attn_h @ Wo[h*hd:(h+1)*hd, :].
    wo_h = wo.reshape(HEAD_NUM, HEAD_DIM, H).astype(jnp.bfloat16)       # (HN, HD, H)
    bo2 = bo.reshape(1, H)

    out = pl.pallas_call(
        mha_kernel,
        out_shape=jax.ShapeDtypeStruct((n, H), x.dtype),
        grid=(1,),
        in_specs=[
            pl.BlockSpec((n, H), lambda i: (0, 0)),                     # X (flattened)
            pl.BlockSpec((H, 3 * H), lambda i: (0, 0)),                 # Wqkv
            pl.BlockSpec((1, 3 * H), lambda i: (0, 0)),                 # bqkv
            pl.BlockSpec((HEAD_NUM, HEAD_DIM, H), lambda i: (0, 0, 0)), # Wo per head
            pl.BlockSpec((1, H), lambda i: (0, 0)),                     # bo
        ],
        out_specs=pl.BlockSpec((n, H), lambda i: (0, 0)),
        compiler_params=pltpu.CompilerParams(
            dimension_semantics=("arbitrary",)),
    )(x2, wqkv, bqkv, wo_h, bo2)
    return out.reshape(B, S, H)


def reference_mha(x, wq, bq, wk, bk, wv, bv, wo, bo):
    """Pure-JAX f32 reference mirroring the PyTorch forward (no mask, eval dropout)."""
    B, S, H = x.shape
    q = x @ wq + bq
    k = x @ wk + bk
    v = x @ wv + bv

    def split(t):
        return t.reshape(B, S, HEAD_NUM, HEAD_DIM).transpose(0, 2, 1, 3)

    q, k, v = split(q), split(k), split(v)
    scores = jnp.einsum("bhqd,bhkd->bhqk", q, k) / math.sqrt(HEAD_DIM)
    probs = jax.nn.softmax(scores, axis=-1)
    attn = jnp.einsum("bhqk,bhkd->bhqd", probs, v)
    attn = attn.transpose(0, 2, 1, 3).reshape(B, S, H)
    return attn @ wo + bo


if __name__ == "__main__":
    key = jax.random.PRNGKey(0)
    keys = jax.random.split(key, 9)

    x = jax.random.normal(keys[0], (BATCH, SEQ, HIDDEN), dtype=jnp.float32)

    # Deterministic parameter init (shapes from nn.Linear(hidden, hidden)),
    # stored transposed so Y = X @ W + b.
    s = 1.0 / math.sqrt(HIDDEN)
    wq = jax.random.uniform(keys[1], (HIDDEN, HIDDEN), jnp.float32, -s, s)
    bq = jax.random.uniform(keys[2], (HIDDEN,), jnp.float32, -s, s)
    wk = jax.random.uniform(keys[3], (HIDDEN, HIDDEN), jnp.float32, -s, s)
    bk = jax.random.uniform(keys[4], (HIDDEN,), jnp.float32, -s, s)
    wv = jax.random.uniform(keys[5], (HIDDEN, HIDDEN), jnp.float32, -s, s)
    bv = jax.random.uniform(keys[6], (HIDDEN,), jnp.float32, -s, s)
    wo = jax.random.uniform(keys[7], (HIDDEN, HIDDEN), jnp.float32, -s, s)
    bo = jax.random.uniform(keys[8], (HIDDEN,), jnp.float32, -s, s)

    out = multi_head_self_attention(x, wq, bq, wk, bk, wv, bv, wo, bo)
    out = jax.block_until_ready(out)

    ref = reference_mha(x, wq, bq, wk, bk, wv, bv, wo, bo)
    assert out.shape == (BATCH, SEQ, HIDDEN)
    # Tolerance loosened vs. the f32 reference because matmuls run in bf16
    # (f32 accumulation) and softmax uses the approx EUP reciprocal.
    assert jnp.allclose(out, ref, atol=2e-2, rtol=2e-2), "mismatch vs reference"

    print("KERNEL_OK")
</pallas_src>

<mosaic_0001>
module attributes {stable_mosaic.version = 11 : i64} {
  func.func @mha_kernel(%arg0: i32, %arg1: memref<16x32xf32, #tpu.memory_space<vmem>>, %arg2: memref<32x96xbf16, #tpu.memory_space<vmem>>, %arg3: memref<1x96xf32, #tpu.memory_space<vmem>>, %arg4: memref<4x8x32xbf16, #tpu.memory_space<vmem>>, %arg5: memref<1x32xf32, #tpu.memory_space<vmem>>, %arg6: memref<16x32xf32, #tpu.memory_space<vmem>>) attributes {dimension_semantics = [#tpu.dimension_semantics<arbitrary>], iteration_bounds = array<i64: 1>, scalar_prefetch = 0 : i64, scratch_operands = 0 : i64, tpu.core_type = #tpu.core_type<tc>, window_params = [{pipeline_mode = #tpu.pipeline_mode<synchronous>, transform_indices = @transform_0, window_bounds = array<i64: 16, 32>}, {pipeline_mode = #tpu.pipeline_mode<synchronous>, transform_indices = @transform_1, window_bounds = array<i64: 32, 96>}, {pipeline_mode = #tpu.pipeline_mode<synchronous>, transform_indices = @transform_2, window_bounds = array<i64: 1, 96>}, {pipeline_mode = #tpu.pipeline_mode<synchronous>, transform_indices = @transform_3, window_bounds = array<i64: 4, 8, 32>}, {pipeline_mode = #tpu.pipeline_mode<synchronous>, transform_indices = @transform_4, window_bounds = array<i64: 1, 32>}, {pipeline_mode = #tpu.pipeline_mode<synchronous>, transform_indices = @transform_5, window_bounds = array<i64: 16, 32>}]} {
    %c0 = arith.constant 0 : index
    %c0_0 = arith.constant 0 : index
    %0 = vector.load %arg1[%c0, %c0_0] : memref<16x32xf32, #tpu.memory_space<vmem>>, vector<16x32xf32>
    %1 = arith.truncf %0 : vector<16x32xf32> to vector<16x32xbf16>
    %c0_1 = arith.constant 0 : index
    %c0_2 = arith.constant 0 : index
    %2 = vector.load %arg2[%c0_1, %c0_2] : memref<32x96xbf16, #tpu.memory_space<vmem>>, vector<32x96xbf16>
    %cst = arith.constant dense<0.000000e+00> : vector<16x96xf32>
    %3 = tpu.matmul %1, %2, %cst {dimension_numbers = #tpu.dot_dimension_numbers<[1], [0], [0], [1], [0, 0, 1, 1], [], []>} : vector<16x32xbf16>, vector<32x96xbf16>, vector<16x96xf32> -> vector<16x96xf32>
    %c0_3 = arith.constant 0 : index
    %c0_4 = arith.constant 0 : index
    %4 = vector.load %arg3[%c0_3, %c0_4] : memref<1x96xf32, #tpu.memory_space<vmem>>, vector<1x96xf32>
    %5 = vector.broadcast %4 : vector<1x96xf32> to vector<16x96xf32>
    %6 = arith.addf %3, %5 : vector<16x96xf32>
    %cst_5 = arith.constant 0.000000e+00 : f32
    %7 = vector.broadcast %cst_5 : f32 to vector<16x32xf32>
    %8 = vector.extract_strided_slice %6 {offsets = [0, 0], sizes = [16, 8], strides = [1, 1]} : vector<16x96xf32> to vector<16x8xf32>
    %9 = vector.shape_cast %8 : vector<16x8xf32> to vector<2x8x8xf32>
    %10 = vector.extract_strided_slice %6 {offsets = [0, 32], sizes = [16, 8], strides = [1, 1]} : vector<16x96xf32> to vector<16x8xf32>
    %11 = vector.shape_cast %10 : vector<16x8xf32> to vector<2x8x8xf32>
    %12 = vector.extract_strided_slice %6 {offsets = [0, 64], sizes = [16, 8], strides = [1, 1]} : vector<16x96xf32> to vector<16x8xf32>
    %13 = vector.shape_cast %12 : vector<16x8xf32> to vector<2x8x8xf32>
    %14 = arith.truncf %9 : vector<2x8x8xf32> to vector<2x8x8xbf16>
    %15 = arith.truncf %11 : vector<2x8x8xf32> to vector<2x8x8xbf16>
    "tpu.trace_start"() <{level = 10 : i32, message = "bqd,bkd->bqk"}> : () -> ()
    %cst_6 = arith.constant dense<0.000000e+00> : vector<2x8x8xf32>
    %16 = tpu.matmul %14, %15, %cst_6 {dimension_numbers = #tpu.dot_dimension_numbers<[2], [2], [1], [1], [0, 0, 0, 1, 1, 1], [0], [0]>} : vector<2x8x8xbf16>, vector<2x8x8xbf16>, vector<2x8x8xf32> -> vector<2x8x8xf32>
    "tpu.trace_stop"() : () -> ()
    %cst_7 = arith.constant 0.353553385 : f32
    %17 = vector.broadcast %cst_7 : f32 to vector<2x8x8xf32>
    %18 = arith.mulf %16, %17 : vector<2x8x8xf32>
    %cst_8 = arith.constant dense<0xFF800000> : vector<2x8xf32>
    %19 = vector.multi_reduction <maximumf>, %18, %cst_8 [2] : vector<2x8x8xf32> to vector<2x8xf32>
    %20 = vector.shape_cast %19 : vector<2x8xf32> to vector<2x8x1xf32>
    %21 = vector.broadcast %20 : vector<2x8x1xf32> to vector<2x8x8xf32>
    %22 = arith.subf %18, %21 : vector<2x8x8xf32>
    %23 = math.exp %22 : vector<2x8x8xf32>
    %cst_9 = arith.constant dense<0.000000e+00> : vector<2x8xf32>
    %24 = vector.multi_reduction <add>, %23, %cst_9 [2] : vector<2x8x8xf32> to vector<2x8xf32>
    %25 = vector.shape_cast %24 : vector<2x8xf32> to vector<2x8x1xf32>
    %26 = tpu.reciprocal %25 {approx = true} : vector<2x8x1xf32> -> vector<2x8x1xf32>
    %27 = vector.broadcast %26 : vector<2x8x1xf32> to vector<2x8x8xf32>
    %28 = arith.mulf %23, %27 : vector<2x8x8xf32>
    %29 = arith.truncf %28 : vector<2x8x8xf32> to vector<2x8x8xbf16>
    %30 = arith.truncf %13 : vector<2x8x8xf32> to vector<2x8x8xbf16>
    "tpu.trace_start"() <{level = 10 : i32, message = "bqk,bkd->bqd"}> : () -> ()
    %cst_10 = arith.constant dense<0.000000e+00> : vector<2x8x8xf32>
    %31 = tpu.matmul %29, %30, %cst_10 {dimension_numbers = #tpu.dot_dimension_numbers<[2], [1], [1], [2], [0, 0, 0, 1, 1, 2], [0], [0]>} : vector<2x8x8xbf16>, vector<2x8x8xbf16>, vector<2x8x8xf32> -> vector<2x8x8xf32>
    "tpu.trace_stop"() : () -> ()
    %32 = vector.shape_cast %31 : vector<2x8x8xf32> to vector<16x8xf32>
    %33 = arith.truncf %32 : vector<16x8xf32> to vector<16x8xbf16>
    %c0_11 = arith.constant 0 : index
    %c0_12 = arith.constant 0 : index
    %c0_13 = arith.constant 0 : index
    %34 = vector.load %arg4[%c0_11, %c0_12, %c0_13] : memref<4x8x32xbf16, #tpu.memory_space<vmem>>, vector<1x8x32xbf16>
    %35 = vector.shape_cast %34 : vector<1x8x32xbf16> to vector<8x32xbf16>
    %cst_14 = arith.constant dense<0.000000e+00> : vector<16x32xf32>
    %36 = tpu.matmul %33, %35, %cst_14 {dimension_numbers = #tpu.dot_dimension_numbers<[1], [0], [0], [1], [0, 0, 1, 1], [], []>} : vector<16x8xbf16>, vector<8x32xbf16>, vector<16x32xf32> -> vector<16x32xf32>
    %37 = arith.addf %7, %36 : vector<16x32xf32>
    %38 = vector.extract_strided_slice %6 {offsets = [0, 8], sizes = [16, 8], strides = [1, 1]} : vector<16x96xf32> to vector<16x8xf32>
    %39 = vector.shape_cast %38 : vector<16x8xf32> to vector<2x8x8xf32>
    %40 = vector.extract_strided_slice %6 {offsets = [0, 40], sizes = [16, 8], strides = [1, 1]} : vector<16x96xf32> to vector<16x8xf32>
    %41 = vector.shape_cast %40 : vector<16x8xf32> to vector<2x8x8xf32>
    %42 = vector.extract_strided_slice %6 {offsets = [0, 72], sizes = [16, 8], strides = [1, 1]} : vector<16x96xf32> to vector<16x8xf32>
    %43 = vector.shape_cast %42 : vector<16x8xf32> to vector<2x8x8xf32>
    %44 = arith.truncf %39 : vector<2x8x8xf32> to vector<2x8x8xbf16>
    %45 = arith.truncf %41 : vector<2x8x8xf32> to vector<2x8x8xbf16>
    "tpu.trace_start"() <{level = 10 : i32, message = "bqd,bkd->bqk"}> : () -> ()
    %cst_15 = arith.constant dense<0.000000e+00> : vector<2x8x8xf32>
    %46 = tpu.matmul %44, %45, %cst_15 {dimension_numbers = #tpu.dot_dimension_numbers<[2], [2], [1], [1], [0, 0, 0, 1, 1, 1], [0], [0]>} : vector<2x8x8xbf16>, vector<2x8x8xbf16>, vector<2x8x8xf32> -> vector<2x8x8xf32>
    "tpu.trace_stop"() : () -> ()
    %cst_16 = arith.constant 0.353553385 : f32
    %47 = vector.broadcast %cst_16 : f32 to vector<2x8x8xf32>
    %48 = arith.mulf %46, %47 : vector<2x8x8xf32>
    %cst_17 = arith.constant dense<0xFF800000> : vector<2x8xf32>
    %49 = vector.multi_reduction <maximumf>, %48, %cst_17 [2] : vector<2x8x8xf32> to vector<2x8xf32>
    %50 = vector.shape_cast %49 : vector<2x8xf32> to vector<2x8x1xf32>
    %51 = vector.broadcast %50 : vector<2x8x1xf32> to vector<2x8x8xf32>
    %52 = arith.subf %48, %51 : vector<2x8x8xf32>
    %53 = math.exp %52 : vector<2x8x8xf32>
    %cst_18 = arith.constant dense<0.000000e+00> : vector<2x8xf32>
    %54 = vector.multi_reduction <add>, %53, %cst_18 [2] : vector<2x8x8xf32> to vector<2x8xf32>
    %55 = vector.shape_cast %54 : vector<2x8xf32> to vector<2x8x1xf32>
    %56 = tpu.reciprocal %55 {approx = true} : vector<2x8x1xf32> -> vector<2x8x1xf32>
    %57 = vector.broadcast %56 : vector<2x8x1xf32> to vector<2x8x8xf32>
    %58 = arith.mulf %53, %57 : vector<2x8x8xf32>
    %59 = arith.truncf %58 : vector<2x8x8xf32> to vector<2x8x8xbf16>
    %60 = arith.truncf %43 : vector<2x8x8xf32> to vector<2x8x8xbf16>
    "tpu.trace_start"() <{level = 10 : i32, message = "bqk,bkd->bqd"}> : () -> ()
    %cst_19 = arith.constant dense<0.000000e+00> : vector<2x8x8xf32>
    %61 = tpu.matmul %59, %60, %cst_19 {dimension_numbers = #tpu.dot_dimension_numbers<[2], [1], [1], [2], [0, 0, 0, 1, 1, 2], [0], [0]>} : vector<2x8x8xbf16>, vector<2x8x8xbf16>, vector<2x8x8xf32> -> vector<2x8x8xf32>
    "tpu.trace_stop"() : () -> ()
    %62 = vector.shape_cast %61 : vector<2x8x8xf32> to vector<16x8xf32>
    %63 = arith.truncf %62 : vector<16x8xf32> to vector<16x8xbf16>
    %c1 = arith.constant 1 : index
    %c0_20 = arith.constant 0 : index
    %c0_21 = arith.constant 0 : index
    %64 = vector.load %arg4[%c1, %c0_20, %c0_21] : memref<4x8x32xbf16, #tpu.memory_space<vmem>>, vector<1x8x32xbf16>
    %65 = vector.shape_cast %64 : vector<1x8x32xbf16> to vector<8x32xbf16>
    %cst_22 = arith.constant dense<0.000000e+00> : vector<16x32xf32>
    %66 = tpu.matmul %63, %65, %cst_22 {dimension_numbers = #tpu.dot_dimension_numbers<[1], [0], [0], [1], [0, 0, 1, 1], [], []>} : vector<16x8xbf16>, vector<8x32xbf16>, vector<16x32xf32> -> vector<16x32xf32>
    %67 = arith.addf %37, %66 : vector<16x32xf32>
    %68 = vector.extract_strided_slice %6 {offsets = [0, 16], sizes = [16, 8], strides = [1, 1]} : vector<16x96xf32> to vector<16x8xf32>
    %69 = vector.shape_cast %68 : vector<16x8xf32> to vector<2x8x8xf32>
    %70 = vector.extract_strided_slice %6 {offsets = [0, 48], sizes = [16, 8], strides = [1, 1]} : vector<16x96xf32> to vector<16x8xf32>
    %71 = vector.shape_cast %70 : vector<16x8xf32> to vector<2x8x8xf32>
    %72 = vector.extract_strided_slice %6 {offsets = [0, 80], sizes = [16, 8], strides = [1, 1]} : vector<16x96xf32> to vector<16x8xf32>
    %73 = vector.shape_cast %72 : vector<16x8xf32> to vector<2x8x8xf32>
    %74 = arith.truncf %69 : vector<2x8x8xf32> to vector<2x8x8xbf16>
    %75 = arith.truncf %71 : vector<2x8x8xf32> to vector<2x8x8xbf16>
    "tpu.trace_start"() <{level = 10 : i32, message = "bqd,bkd->bqk"}> : () -> ()
    %cst_23 = arith.constant dense<0.000000e+00> : vector<2x8x8xf32>
    %76 = tpu.matmul %74, %75, %cst_23 {dimension_numbers = #tpu.dot_dimension_numbers<[2], [2], [1], [1], [0, 0, 0, 1, 1, 1], [0], [0]>} : vector<2x8x8xbf16>, vector<2x8x8xbf16>, vector<2x8x8xf32> -> vector<2x8x8xf32>
    "tpu.trace_stop"() : () -> ()
    %cst_24 = arith.constant 0.353553385 : f32
    %77 = vector.broadcast %cst_24 : f32 to vector<2x8x8xf32>
    %78 = arith.mulf %76, %77 : vector<2x8x8xf32>
    %cst_25 = arith.constant dense<0xFF800000> : vector<2x8xf32>
    %79 = vector.multi_reduction <maximumf>, %78, %cst_25 [2] : vector<2x8x8xf32> to vector<2x8xf32>
    %80 = vector.shape_cast %79 : vector<2x8xf32> to vector<2x8x1xf32>
    %81 = vector.broadcast %80 : vector<2x8x1xf32> to vector<2x8x8xf32>
    %82 = arith.subf %78, %81 : vector<2x8x8xf32>
    %83 = math.exp %82 : vector<2x8x8xf32>
    %cst_26 = arith.constant dense<0.000000e+00> : vector<2x8xf32>
    %84 = vector.multi_reduction <add>, %83, %cst_26 [2] : vector<2x8x8xf32> to vector<2x8xf32>
    %85 = vector.shape_cast %84 : vector<2x8xf32> to vector<2x8x1xf32>
    %86 = tpu.reciprocal %85 {approx = true} : vector<2x8x1xf32> -> vector<2x8x1xf32>
    %87 = vector.broadcast %86 : vector<2x8x1xf32> to vector<2x8x8xf32>
    %88 = arith.mulf %83, %87 : vector<2x8x8xf32>
    %89 = arith.truncf %88 : vector<2x8x8xf32> to vector<2x8x8xbf16>
    %90 = arith.truncf %73 : vector<2x8x8xf32> to vector<2x8x8xbf16>
    "tpu.trace_start"() <{level = 10 : i32, message = "bqk,bkd->bqd"}> : () -> ()
    %cst_27 = arith.constant dense<0.000000e+00> : vector<2x8x8xf32>
    %91 = tpu.matmul %89, %90, %cst_27 {dimension_numbers = #tpu.dot_dimension_numbers<[2], [1], [1], [2], [0, 0, 0, 1, 1, 2], [0], [0]>} : vector<2x8x8xbf16>, vector<2x8x8xbf16>, vector<2x8x8xf32> -> vector<2x8x8xf32>
    "tpu.trace_stop"() : () -> ()
    %92 = vector.shape_cast %91 : vector<2x8x8xf32> to vector<16x8xf32>
    %93 = arith.truncf %92 : vector<16x8xf32> to vector<16x8xbf16>
    %c2 = arith.constant 2 : index
    %c0_28 = arith.constant 0 : index
    %c0_29 = arith.constant 0 : index
    %94 = vector.load %arg4[%c2, %c0_28, %c0_29] : memref<4x8x32xbf16, #tpu.memory_space<vmem>>, vector<1x8x32xbf16>
    %95 = vector.shape_cast %94 : vector<1x8x32xbf16> to vector<8x32xbf16>
    %cst_30 = arith.constant dense<0.000000e+00> : vector<16x32xf32>
    %96 = tpu.matmul %93, %95, %cst_30 {dimension_numbers = #tpu.dot_dimension_numbers<[1], [0], [0], [1], [0, 0, 1, 1], [], []>} : vector<16x8xbf16>, vector<8x32xbf16>, vector<16x32xf32> -> vector<16x32xf32>
    %97 = arith.addf %67, %96 : vector<16x32xf32>
    %98 = vector.extract_strided_slice %6 {offsets = [0, 24], sizes = [16, 8], strides = [1, 1]} : vector<16x96xf32> to vector<16x8xf32>
    %99 = vector.shape_cast %98 : vector<16x8xf32> to vector<2x8x8xf32>
    %100 = vector.extract_strided_slice %6 {offsets = [0, 56], sizes = [16, 8], strides = [1, 1]} : vector<16x96xf32> to vector<16x8xf32>
    %101 = vector.shape_cast %100 : vector<16x8xf32> to vector<2x8x8xf32>
    %102 = vector.extract_strided_slice %6 {offsets = [0, 88], sizes = [16, 8], strides = [1, 1]} : vector<16x96xf32> to vector<16x8xf32>
    %103 = vector.shape_cast %102 : vector<16x8xf32> to vector<2x8x8xf32>
    %104 = arith.truncf %99 : vector<2x8x8xf32> to vector<2x8x8xbf16>
    %105 = arith.truncf %101 : vector<2x8x8xf32> to vector<2x8x8xbf16>
    "tpu.trace_start"() <{level = 10 : i32, message = "bqd,bkd->bqk"}> : () -> ()
    %cst_31 = arith.constant dense<0.000000e+00> : vector<2x8x8xf32>
    %106 = tpu.matmul %104, %105, %cst_31 {dimension_numbers = #tpu.dot_dimension_numbers<[2], [2], [1], [1], [0, 0, 0, 1, 1, 1], [0], [0]>} : vector<2x8x8xbf16>, vector<2x8x8xbf16>, vector<2x8x8xf32> -> vector<2x8x8xf32>
    "tpu.trace_stop"() : () -> ()
    %cst_32 = arith.constant 0.353553385 : f32
    %107 = vector.broadcast %cst_32 : f32 to vector<2x8x8xf32>
    %108 = arith.mulf %106, %107 : vector<2x8x8xf32>
    %cst_33 = arith.constant dense<0xFF800000> : vector<2x8xf32>
    %109 = vector.multi_reduction <maximumf>, %108, %cst_33 [2] : vector<2x8x8xf32> to vector<2x8xf32>
    %110 = vector.shape_cast %109 : vector<2x8xf32> to vector<2x8x1xf32>
    %111 = vector.broadcast %110 : vector<2x8x1xf32> to vector<2x8x8xf32>
    %112 = arith.subf %108, %111 : vector<2x8x8xf32>
    %113 = math.exp %112 : vector<2x8x8xf32>
    %cst_34 = arith.constant dense<0.000000e+00> : vector<2x8xf32>
    %114 = vector.multi_reduction <add>, %113, %cst_34 [2] : vector<2x8x8xf32> to vector<2x8xf32>
    %115 = vector.shape_cast %114 : vector<2x8xf32> to vector<2x8x1xf32>
    %116 = tpu.reciprocal %115 {approx = true} : vector<2x8x1xf32> -> vector<2x8x1xf32>
    %117 = vector.broadcast %116 : vector<2x8x1xf32> to vector<2x8x8xf32>
    %118 = arith.mulf %113, %117 : vector<2x8x8xf32>
    %119 = arith.truncf %118 : vector<2x8x8xf32> to vector<2x8x8xbf16>
    %120 = arith.truncf %103 : vector<2x8x8xf32> to vector<2x8x8xbf16>
    "tpu.trace_start"() <{level = 10 : i32, message = "bqk,bkd->bqd"}> : () -> ()
    %cst_35 = arith.constant dense<0.000000e+00> : vector<2x8x8xf32>
    %121 = tpu.matmul %119, %120, %cst_35 {dimension_numbers = #tpu.dot_dimension_numbers<[2], [1], [1], [2], [0, 0, 0, 1, 1, 2], [0], [0]>} : vector<2x8x8xbf16>, vector<2x8x8xbf16>, vector<2x8x8xf32> -> vector<2x8x8xf32>
    "tpu.trace_stop"() : () -> ()
    %122 = vector.shape_cast %121 : vector<2x8x8xf32> to vector<16x8xf32>
    %123 = arith.truncf %122 : vector<16x8xf32> to vector<16x8xbf16>
    %c3 = arith.constant 3 : index
    %c0_36 = arith.constant 0 : index
    %c0_37 = arith.constant 0 : index
    %124 = vector.load %arg4[%c3, %c0_36, %c0_37] : memref<4x8x32xbf16, #tpu.memory_space<vmem>>, vector<1x8x32xbf16>
    %125 = vector.shape_cast %124 : vector<1x8x32xbf16> to vector<8x32xbf16>
    %cst_38 = arith.constant dense<0.000000e+00> : vector<16x32xf32>
    %126 = tpu.matmul %123, %125, %cst_38 {dimension_numbers = #tpu.dot_dimension_numbers<[1], [0], [0], [1], [0, 0, 1, 1], [], []>} : vector<16x8xbf16>, vector<8x32xbf16>, vector<16x32xf32> -> vector<16x32xf32>
    %127 = arith.addf %97, %126 : vector<16x32xf32>
    %c0_39 = arith.constant 0 : index
    %c0_40 = arith.constant 0 : index
    %128 = vector.load %arg5[%c0_39, %c0_40] : memref<1x32xf32, #tpu.memory_space<vmem>>, vector<1x32xf32>
    %129 = vector.broadcast %128 : vector<1x32xf32> to vector<16x32xf32>
    %130 = arith.addf %127, %129 : vector<16x32xf32>
    %c0_41 = arith.constant 0 : index
    %c0_42 = arith.constant 0 : index
    %131 = vector.load %arg6[%c0_41, %c0_42] : memref<16x32xf32, #tpu.memory_space<vmem>>, vector<16x32xf32>
    tpu.vector_store %arg6[%c0_41, %c0_42], %130 {strides = array<i32>} : memref<16x32xf32, #tpu.memory_space<vmem>>, vector<16x32xf32>,
    return
  }
  func.func @transform_0(%arg0: i32) -> (i32, i32) {
    %c0_i32 = arith.constant 0 : i32
    %c0_i32_0 = arith.constant 0 : i32
    %c0_i32_1 = arith.constant 0 : i32
    return %c0_i32, %c0_i32_0 : i32, i32
  }
  func.func @transform_1(%arg0: i32) -> (i32, i32) {
    %c0_i32 = arith.constant 0 : i32
    %c0_i32_0 = arith.constant 0 : i32
    %c0_i32_1 = arith.constant 0 : i32
    return %c0_i32, %c0_i32_0 : i32, i32
  }
  func.func @transform_2(%arg0: i32) -> (i32, i32) {
    %c0_i32 = arith.constant 0 : i32
    %c0_i32_0 = arith.constant 0 : i32
    %c0_i32_1 = arith.constant 0 : i32
    return %c0_i32, %c0_i32_0 : i32, i32
  }
  func.func @transform_3(%arg0: i32) -> (i32, i32, i32) {
    %c0_i32 = arith.constant 0 : i32
    %c0_i32_0 = arith.constant 0 : i32
    %c0_i32_1 = arith.constant 0 : i32
    %c0_i32_2 = arith.constant 0 : i32
    return %c0_i32, %c0_i32_0, %c0_i32_1 : i32, i32, i32
  }
  func.func @transform_4(%arg0: i32) -> (i32, i32) {
    %c0_i32 = arith.constant 0 : i32
    %c0_i32_0 = arith.constant 0 : i32
    %c0_i32_1 = arith.constant 0 : i32
    return %c0_i32, %c0_i32_0 : i32, i32
  }
  func.func @transform_5(%arg0: i32) -> (i32, i32) {
    %c0_i32 = arith.constant 0 : i32
    %c0_i32_0 = arith.constant 0 : i32
    %c0_i32_1 = arith.constant 0 : i32
    return %c0_i32, %c0_i32_0 : i32, i32
  }
}

</mosaic_0001>

<llo_original>
// kernel: tpu_custom_call.1
$region0: #{tpu_custom_call.1}
  #allocation0 [shape = 'u32[]', space=smem, size = 0x4, offset = 0x4, fixed_abs, tag = 'smem constant byte address 0x4 - core index']
  #allocation1 [shape = 'u32[144,128]{1,0:T(1,128)}', space=vmem, size = 0x12000, scoped, tag = 'internal scratch']
  %s0 = inlined_call_operand.hbm [shape: f32[16,32], index: 0, kind: input, shape index: {}]
  %s1 = inlined_call_operand.hbm [shape: bf16[32,96], index: 1, kind: input, shape index: {}]
  %s2 = inlined_call_operand.vmem [shape: f32[1,96], index: 2, kind: input, shape index: {}]
  %s3 = inlined_call_operand.hbm [shape: bf16[4,8,32], index: 3, kind: input, shape index: {}]
  %s4 = inlined_call_operand.vmem [shape: f32[1,32], index: 4, kind: input, shape index: {}]
  %s5 = inlined_call_operand.hbm [shape: f32[16,32], index: 5, kind: output, shape index: {}]
  %s6 = sld [smem:[#allocation0]]
  $region42: #{tpu_custom_call.1} parent=0
    _
  %s8 = ssub.s32 1, %s6
  %s9 = scalar_select 0, %s8, %s6
  $region1: #{tpu_custom_call.1} parent=0
    #allocation2 [shape = 'u8[8192]{0}', space=vmem, size = 0x2000, scoped, tag = 'input window, operand 0, single buffered']
    #allocation3 [shape = 's32[1]{0}', space=sflag, size = 0x4, scoped, tag = 'scoped memory for tpu_custom_call.1']
    #allocation4 [shape = 's32[1]{0}', space=sflag, size = 0x4, scoped, tag = 'scoped memory for tpu_custom_call.1']
    #allocation5 [shape = 'u8[8192]{0}', space=vmem, size = 0x2000, scoped, tag = 'input window, operand 1, single buffered']
    #allocation6 [shape = 's32[1]{0}', space=sflag, size = 0x4, scoped, tag = 'scoped memory for tpu_custom_call.1']
    #allocation7 [shape = 'u8[8192]{0}', space=vmem, size = 0x2000, scoped, tag = 'input window, operand 3, single buffered']
    #allocation8 [shape = 'u8[8192]{0}', space=vmem, size = 0x2000, scoped, tag = 'output window, operand 0, single buffered']
    %10 = vsyncpa [#allocation3], 0
    %11 = vsyncpa [#allocation6], 0
    %12 = vsyncpa [#allocation4], 0
    // Predicated region
    $region2: #{tpu_custom_call.1} parent=1 // pred_check
      _
    $region3: #{tpu_custom_call.1} parent=1 // pred_check_branch
      %14 = sbr.rel (0) target = $region5
    $region4: #{tpu_custom_call.1} parent=1 // pred_region
      %s16 = ssub.s32 256, 256
      %17 = vsyncadd [#allocation3], %s16
      %s18 = sshll.u32 [#allocation2], 4
      %s19 = int_to_ptr.vmem [resolvable:$true] %s18
      %24 = dma.hbm_to_vmem [thread:$0]  %s0, 256, %s19, [#allocation3], 128, 128, 8
    $region5: #{tpu_custom_call.1} parent=1 // pred_fallthru
      _
    // Predicated region
    $region6: #{tpu_custom_call.1} parent=1 // pred_check
      _
    $region7: #{tpu_custom_call.1} parent=1 // pred_check_branch
      %26 = sbr.rel (0) target = $region9
    $region8: #{tpu_custom_call.1} parent=1 // pred_region
      %s28 = ssub.s32 256, 256
      %29 = vsyncadd [#allocation6], %s28
      %s30 = sshll.u32 [#allocation5], 4
      %s31 = int_to_ptr.vmem [resolvable:$true] %s30
      %36 = dma.hbm_to_vmem [thread:$0]  %s1, 256, %s31, [#allocation6], 64, 64, 4
    $region9: #{tpu_custom_call.1} parent=1 // pred_fallthru
      _
    // Predicated region
    $region10: #{tpu_custom_call.1} parent=1 // pred_check
      _
    $region11: #{tpu_custom_call.1} parent=1 // pred_check_branch
      %38 = sbr.rel (0) target = $region13
    $region12: #{tpu_custom_call.1} parent=1 // pred_region
      _
    $region13: #{tpu_custom_call.1} parent=1 // pred_fallthru
      _
    // Predicated region
    $region14: #{tpu_custom_call.1} parent=1 // pred_check
      _
    $region15: #{tpu_custom_call.1} parent=1 // pred_check_branch
      %40 = sbr.rel (0) target = $region17
    $region16: #{tpu_custom_call.1} parent=1 // pred_region
      %s42 = ssub.s32 256, 256
      %43 = vsyncadd [#allocation6], %s42
      %s44 = sshll.u32 [#allocation7], 4
      %s45 = int_to_ptr.vmem [resolvable:$true] %s44
      %50 = dma.hbm_to_vmem [thread:$0]  %s3, 256, %s45, [#allocation6], 64, 64, 4
    $region17: #{tpu_custom_call.1} parent=1 // pred_fallthru
      _
    // Predicated region
    $region18: #{tpu_custom_call.1} parent=1 // pred_check
      _
    $region19: #{tpu_custom_call.1} parent=1 // pred_check_branch
      %52 = sbr.rel (0) target = $region21
    $region20: #{tpu_custom_call.1} parent=1 // pred_region
      _
    $region21: #{tpu_custom_call.1} parent=1 // pred_fallthru
      _
    // Predicated region
    $region22: #{tpu_custom_call.1} parent=1 // pred_check
      _
    $region23: #{tpu_custom_call.1} parent=1 // pred_check_branch
      %54 = sbr.rel (0) target = $region25
    $region24: #{tpu_custom_call.1} parent=1 // pred_region
      %55 = dma.done [#allocation3], 256
    $region25: #{tpu_custom_call.1} parent=1 // pred_fallthru
      _
    // Predicated region
    $region26: #{tpu_custom_call.1} parent=1 // pred_check
      _
    $region27: #{tpu_custom_call.1} parent=1 // pred_check_branch
      %57 = sbr.rel (0) target = $region29
    $region28: #{tpu_custom_call.1} parent=1 // pred_region
      %58 = dma.done [#allocation6], 256
    $region29: #{tpu_custom_call.1} parent=1 // pred_fallthru
      _
    // Predicated region
    $region30: #{tpu_custom_call.1} parent=1 // pred_check
      _
    $region31: #{tpu_custom_call.1} parent=1 // pred_check_branch
      %60 = sbr.rel (0) target = $region33
    $region32: #{tpu_custom_call.1} parent=1 // pred_region
      %61 = dma.done [#allocation6], 256
    $region33: #{tpu_custom_call.1} parent=1 // pred_fallthru
      _
    %v63 = vld [vmem:[#allocation2] sm:$0xff]
    %v64 = vld [vmem:[#allocation2 + $0x8] sm:$0xff]
    %v65 = vpack.c.bf16 %v64, %v63
    %v66 = vld [vmem:[#allocation5] sm:$0xf]
    %v67 = vld [vmem:[#allocation5 + $0x4] sm:$0xf]
    %v68 = vld [vmem:[#allocation5 + $0x8] sm:$0xf]
    %v69 = vld [vmem:[#allocation5 + $0xc] sm:$0xf]
    %v70 = vld [vmem:[%s2] sm:$0x1]
    %v72 = vlaneseq
    %v73 = vshrl.u32 %v72, 7
    %v74 = vsub.s32 0, %v73
    %v75 = vrot.slane %v70, %v74
    %v81 = vunpack.c.l.b16 %v66
    %v82 = vunpack.c.l.b16 %v67
    %v83 = vunpack.c.l.b16 %v68
    %v84 = vunpack.c.l.b16 %v69
    %v85 = vpack.c.b16 %v82, %v81
    %v86 = vpack.c.b16 %v84, %v83
    %vm89 = vcmask 261120
    %v91 = vsel %vm89, %v65, 0
    %93 = vmatprep.subr.bf16.mxu0 0
    %94 = vmatpush1.bf16.msra.mxu0 0
    %95 = vmatprep.subr.bf16.mxu0 0
    %96 = vmatpush1.bf16.msra.mxu0 0
    %97 = vmatprep.subr.bf16.mxu0 0
    %98 = vmatpush1.bf16.msra.mxu0 0
    %99 = vmatprep.subr.bf16.mxu0 0
    %100 = vmatpush1.bf16.msra.mxu0 0
    %101 = vmatprep.subr.bf16.mxu0 0
    %102 = vmatpush1.bf16.msra.mxu0 0
    %103 = vmatprep.subr.bf16.mxu0 0
    %104 = vmatpush1.bf16.msra.mxu0 0
    %105 = vmatprep.subr.bf16.mxu0 0
    %106 = vmatpush1.bf16.msra.mxu0 %v86
    %107 = vmatprep.subr.bf16.mxu0 0
    %108 = vmatpush1.bf16.msra.mxu0 %v85
    %109 = vmatprep.subr.bf16.mxu0 0
    %110 = vmatpush2.bf16.msra.mxu0 0
    %111 = vmatprep.subr.bf16.mxu0 0
    %112 = vmatpush2.bf16.msra.mxu0 0
    %113 = vmatprep.subr.bf16.mxu0 0
    %114 = vmatpush2.bf16.msra.mxu0 0
    %115 = vmatprep.subr.bf16.mxu0 0
    %116 = vmatpush2.bf16.msra.mxu0 0
    %117 = vmatprep.subr.bf16.mxu0 0
    %118 = vmatpush2.bf16.msra.mxu0 0
    %119 = vmatprep.subr.bf16.mxu0 0
    %120 = vmatpush2.bf16.msra.mxu0 0
    %121 = vmatprep.subr.bf16.mxu0 0
    %122 = vmatpush2.bf16.msra.mxu0 0
    %123 = vmatprep.subr.bf16.mxu0 0
    %124 = vmatpush2.bf16.msra.mxu0 0
    %125 = vmatprep.mubr.bf16.mxu0 0
    %126 = vmatmul.mubr.bf16.gmra.mxu0 %v91
    %v127 = vpop.f32.mrf.mxu0
    %v128 = vadd.f32 %v75, %v127
    %v129 = vpop.f32.mrf.mxu0
    %v130 = vpop.f32.mrf.mxu0
    %v131 = vadd.f32 %v75, %v130
    %v132 = vpop.f32.mrf.mxu0
    %133 = vdwg.mxu0
    %v134 = vpack.c.bf16 %v128, %v128
    %v135 = vpack.c.bf16 %v131, %v131
    %137 = vrot.lane.b32.xlu0 %v134, 96
    %v138 = vpop.permute.xlu0 %137
    %vm139 = vcmask 64512
    %v141 = vsel %vm139, %v134, 0
    %v144 = vsel %vm139, %v138, 0
    %146 = vmatprep.subr.bf16.mxu0 0
    %147 = vmatpush1.bf16.xpose.msra.mxu0 0
    %148 = vmatprep.subr.bf16.mxu0 0
    %149 = vmatpush1.bf16.xpose.msra.mxu0 0
    %150 = vmatprep.subr.bf16.mxu0 0
    %151 = vmatpush1.bf16.xpose.msra.mxu0 0
    %152 = vmatprep.subr.bf16.mxu0 0
    %153 = vmatpush1.bf16.xpose.msra.mxu0 0
    %154 = vmatprep.subr.bf16.mxu0 0
    %155 = vmatpush1.bf16.xpose.msra.mxu0 0
    %156 = vmatprep.subr.bf16.mxu0 0
    %157 = vmatpush1.bf16.xpose.msra.mxu0 0
    %158 = vmatprep.subr.bf16.mxu0 0
    %159 = vmatpush1.bf16.xpose.msra.mxu0 0
    %160 = vmatprep.subr.bf16.mxu0 0
    %161 = vmatpush1.bf16.xpose.msra.mxu0 %v144
    %162 = vmatprep.subr.bf16.mxu0 0
    %163 = vmatpush2.bf16.xpose.msra.mxu0 0
    %164 = vmatprep.subr.bf16.mxu0 0
    %165 = vmatpush2.bf16.xpose.msra.mxu0 0
    %166 = vmatprep.subr.bf16.mxu0 0
    %167 = vmatpush2.bf16.xpose.msra.mxu0 0
    %168 = vmatprep.subr.bf16.mxu0 0
    %169 = vmatpush2.bf16.xpose.msra.mxu0 0
    %170 = vmatprep.subr.bf16.mxu0 0
    %171 = vmatpush2.bf16.xpose.msra.mxu0 0
    %172 = vmatprep.subr.bf16.mxu0 0
    %173 = vmatpush2.bf16.xpose.msra.mxu0 0
    %174 = vmatprep.subr.bf16.mxu0 0
    %175 = vmatpush2.bf16.xpose.msra.mxu0 0
    %176 = vmatprep.subr.bf16.mxu0 0
    %177 = vmatpush2.bf16.xpose.msra.mxu0 0
    %178 = vmatprep.mubr.bf16.mxu0 0
    %179 = vmatmul.mubr.bf16.gmra.mxu0 %v141
    %v180 = vpop.f32.mrf.mxu0
    %v181 = vadd.f32 0.0, %v180
    %v182 = vpop.f32.mrf.mxu0
    %v183 = vpop.f32.mrf.mxu0
    %v184 = vpop.f32.mrf.mxu0
    %185 = vdwg.mxu0
    %187 = vrot.lane.b32.xlu0 %v135, 96
    %v188 = vpop.permute.xlu0 %187
    %v190 = vsel %vm139, %v135, 0
    %v193 = vsel %vm139, %v188, 0
    %195 = vmatprep.subr.bf16.mxu0 0
    %196 = vmatpush1.bf16.xpose.msra.mxu0 0
    %197 = vmatprep.subr.bf16.mxu0 0
    %198 = vmatpush1.bf16.xpose.msra.mxu0 0
    %199 = vmatprep.subr.bf16.mxu0 0
    %200 = vmatpush1.bf16.xpose.msra.mxu0 0
    %201 = vmatprep.subr.bf16.mxu0 0
    %202 = vmatpush1.bf16.xpose.msra.mxu0 0
    %203 = vmatprep.subr.bf16.mxu0 0
    %204 = vmatpush1.bf16.xpose.msra.mxu0 0
    %205 = vmatprep.subr.bf16.mxu0 0
    %206 = vmatpush1.bf16.xpose.msra.mxu0 0
    %207 = vmatprep.subr.bf16.mxu0 0
    %208 = vmatpush1.bf16.xpose.msra.mxu0 0
    %209 = vmatprep.subr.bf16.mxu0 0
    %210 = vmatpush1.bf16.xpose.msra.mxu0 %v193
    %211 = vmatprep.subr.bf16.mxu0 0
    %212 = vmatpush2.bf16.xpose.msra.mxu0 0
    %213 = vmatprep.subr.bf16.mxu0 0
    %214 = vmatpush2.bf16.xpose.msra.mxu0 0
    %215 = vmatprep.subr.bf16.mxu0 0
    %216 = vmatpush2.bf16.xpose.msra.mxu0 0
    %217 = vmatprep.subr.bf16.mxu0 0
    %218 = vmatpush2.bf16.xpose.msra.mxu0 0
    %219 = vmatprep.subr.bf16.mxu0 0
    %220 = vmatpush2.bf16.xpose.msra.mxu0 0
    %221 = vmatprep.subr.bf16.mxu0 0
    %222 = vmatpush2.bf16.xpose.msra.mxu0 0
    %223 = vmatprep.subr.bf16.mxu0 0
    %224 = vmatpush2.bf16.xpose.msra.mxu0 0
    %225 = vmatprep.subr.bf16.mxu0 0
    %226 = vmatpush2.bf16.xpose.msra.mxu0 0
    %227 = vmatprep.mubr.bf16.mxu0 0
    %228 = vmatmul.mubr.bf16.gmra.mxu0 %v190
    %v229 = vpop.f32.mrf.mxu0
    %v230 = vadd.f32 0.0, %v229
    %v231 = vpop.f32.mrf.mxu0
    %v232 = vpop.f32.mrf.mxu0
    %v233 = vpop.f32.mrf.mxu0
    %234 = vdwg.mxu0
    %v235 = vmul.f32 %v181, 0.35355338
    %v236 = vmul.f32 %v230, 0.35355338
    %v237 = vsel %vm139, %v235, -inf
    %238 = vmax.xlane.f32.xlu0 %v237
    %v239 = vpop.xlane.xlu0 %238
    %v240 = vsel %vm139, %v236, -inf
    %241 = vmax.xlane.f32.xlu0 %v240
    %v242 = vpop.xlane.xlu0 %241
    %v243 = vsub.f32 %v235, %v239
    %v244 = vsub.f32 %v236, %v242
    %v245 = vmul.f32 %v243, 1.442695
    %v246 = vpow.pop %v245
    %v247 = vmul.f32 %v244, 1.442695
    %v248 = vpow.pop %v247
    %v249 = vsel %vm139, %v246, 0.0
    %250 = vadd.xlane.f32.xlu0 %v249
    %v251 = vpop.xlane.xlu0 %250
    %v252 = vsel %vm139, %v248, 0.0
    %253 = vadd.xlane.f32.xlu0 %v252
    %v254 = vpop.xlane.xlu0 %253
    %v255 = vrcp.pop %v251
    %v256 = vrcp.pop %v254
    %v257 = vmul.f32 %v246, %v255
    %v258 = vmul.f32 %v248, %v256
    %v259 = vpack.c.bf16 %v257, %v257
    %v260 = vpack.c.bf16 %v258, %v258
    %261 = vrot.lane.b32.xlu0 %v134, 64
    %v262 = vpop.permute.xlu0 %261
    %v264 = vsel %vm139, %v259, 0
    %vm266 = vcmask 1043456
    %v268 = vsel %vm266, %v262, 0
    %270 = vmatprep.subr.bf16.mxu0 0
    %271 = vmatpush1.bf16.msra.mxu0 0
    %272 = vmatprep.subr.bf16.mxu0 0
    %273 = vmatpush1.bf16.msra.mxu0 0
    %274 = vmatprep.subr.bf16.mxu0 0
    %275 = vmatpush1.bf16.msra.mxu0 0
    %276 = vmatprep.subr.bf16.mxu0 0
    %277 = vmatpush1.bf16.msra.mxu0 0
    %278 = vmatprep.subr.bf16.mxu0 0
    %279 = vmatpush1.bf16.msra.mxu0 0
    %280 = vmatprep.subr.bf16.mxu0 0
    %281 = vmatpush1.bf16.msra.mxu0 0
    %282 = vmatprep.subr.bf16.mxu0 0
    %283 = vmatpush1.bf16.msra.mxu0 0
    %284 = vmatprep.subr.bf16.mxu0 0
    %285 = vmatpush1.bf16.msra.mxu0 %v268
    %286 = vmatprep.subr.bf16.mxu0 0
    %287 = vmatpush2.bf16.msra.mxu0 0
    %288 = vmatprep.subr.bf16.mxu0 0
    %289 = vmatpush2.bf16.msra.mxu0 0
    %290 = vmatprep.subr.bf16.mxu0 0
    %291 = vmatpush2.bf16.msra.mxu0 0
    %292 = vmatprep.subr.bf16.mxu0 0
    %293 = vmatpush2.bf16.msra.mxu0 0
    %294 = vmatprep.subr.bf16.mxu0 0
    %295 = vmatpush2.bf16.msra.mxu0 0
    %296 = vmatprep.subr.bf16.mxu0 0
    %297 = vmatpush2.bf16.msra.mxu0 0
    %298 = vmatprep.subr.bf16.mxu0 0
    %299 = vmatpush2.bf16.msra.mxu0 0
    %300 = vmatprep.subr.bf16.mxu0 0
    %301 = vmatpush2.bf16.msra.mxu0 0
    %302 = vmatprep.mubr.bf16.mxu0 0
    %303 = vmatmul.mubr.bf16.gmra.mxu0 %v264
    %v304 = vpop.f32.mrf.mxu0
    %v305 = vadd.f32 0.0, %v304
    %v306 = vpop.f32.mrf.mxu0
    %v307 = vpop.f32.mrf.mxu0
    %v308 = vpop.f32.mrf.mxu0
    %309 = vdwg.mxu0
    %310 = vrot.lane.b32.xlu0 %v135, 64
    %v311 = vpop.permute.xlu0 %310
    %v313 = vsel %vm139, %v260, 0
    %v316 = vsel %vm266, %v311, 0
    %318 = vmatprep.subr.bf16.mxu0 0
    %319 = vmatpush1.bf16.msra.mxu0 0
    %320 = vmatprep.subr.bf16.mxu0 0
    %321 = vmatpush1.bf16.msra.mxu0 0
    %322 = vmatprep.subr.bf16.mxu0 0
    %323 = vmatpush1.bf16.msra.mxu0 0
    %324 = vmatprep.subr.bf16.mxu0 0
    %325 = vmatpush1.bf16.msra.mxu0 0
    %326 = vmatprep.subr.bf16.mxu0 0
    %327 = vmatpush1.bf16.msra.mxu0 0
    %328 = vmatprep.subr.bf16.mxu0 0
    %329 = vmatpush1.bf16.msra.mxu0 0
    %330 = vmatprep.subr.bf16.mxu0 0
    %331 = vmatpush1.bf16.msra.mxu0 0
    %332 = vmatprep.subr.bf16.mxu0 0
    %333 = vmatpush1.bf16.msra.mxu0 %v316
    %334 = vmatprep.subr.bf16.mxu0 0
    %335 = vmatpush2.bf16.msra.mxu0 0
    %336 = vmatprep.subr.bf16.mxu0 0
    %337 = vmatpush2.bf16.msra.mxu0 0
    %338 = vmatprep.subr.bf16.mxu0 0
    %339 = vmatpush2.bf16.msra.mxu0 0
    %340 = vmatprep.subr.bf16.mxu0 0
    %341 = vmatpush2.bf16.msra.mxu0 0
    %342 = vmatprep.subr.bf16.mxu0 0
    %343 = vmatpush2.bf16.msra.mxu0 0
    %344 = vmatprep.subr.bf16.mxu0 0
    %345 = vmatpush2.bf16.msra.mxu0 0
    %346 = vmatprep.subr.bf16.mxu0 0
    %347 = vmatpush2.bf16.msra.mxu0 0
    %348 = vmatprep.subr.bf16.mxu0 0
    %349 = vmatpush2.bf16.msra.mxu0 0
    %350 = vmatprep.mubr.bf16.mxu0 0
    %351 = vmatmul.mubr.bf16.gmra.mxu0 %v313
    %v352 = vpop.f32.mrf.mxu0
    %v353 = vadd.f32 0.0, %v352
    %v354 = vpop.f32.mrf.mxu0
    %v355 = vpop.f32.mrf.mxu0
    %v356 = vpop.f32.mrf.mxu0
    %357 = vdwg.mxu0
    %v358 = vpack.c.bf16 %v353, %v305
    %v359 = vld [vmem:[#allocation7] sm:$0xf]
    %360 = vrot.lane.b32.xlu0 %v134, 120
    %v361 = vpop.permute.xlu0 %360
    %362 = vrot.lane.b32.xlu0 %v134, 88
    %v363 = vpop.permute.xlu0 %362
    %v365 = vsel %vm139, %v361, 0
    %v368 = vsel %vm139, %v363, 0
    %370 = vmatprep.subr.bf16.mxu0 0
    %371 = vmatpush1.bf16.xpose.msra.mxu0 0
    %372 = vmatprep.subr.bf16.mxu0 0
    %373 = vmatpush1.bf16.xpose.msra.mxu0 0
    %374 = vmatprep.subr.bf16.mxu0 0
    %375 = vmatpush1.bf16.xpose.msra.mxu0 0
    %376 = vmatprep.subr.bf16.mxu0 0
    %377 = vmatpush1.bf16.xpose.msra.mxu0 0
    %378 = vmatprep.subr.bf16.mxu0 0
    %379 = vmatpush1.bf16.xpose.msra.mxu0 0
    %380 = vmatprep.subr.bf16.mxu0 0
    %381 = vmatpush1.bf16.xpose.msra.mxu0 0
    %382 = vmatprep.subr.bf16.mxu0 0
    %383 = vmatpush1.bf16.xpose.msra.mxu0 0
    %384 = vmatprep.subr.bf16.mxu0 0
    %385 = vmatpush1.bf16.xpose.msra.mxu0 %v368
    %386 = vmatprep.subr.bf16.mxu0 0
    %387 = vmatpush2.bf16.xpose.msra.mxu0 0
    %388 = vmatprep.subr.bf16.mxu0 0
    %389 = vmatpush2.bf16.xpose.msra.mxu0 0
    %390 = vmatprep.subr.bf16.mxu0 0
    %391 = vmatpush2.bf16.xpose.msra.mxu0 0
    %392 = vmatprep.subr.bf16.mxu0 0
    %393 = vmatpush2.bf16.xpose.msra.mxu0 0
    %394 = vmatprep.subr.bf16.mxu0 0
    %395 = vmatpush2.bf16.xpose.msra.mxu0 0
    %396 = vmatprep.subr.bf16.mxu0 0
    %397 = vmatpush2.bf16.xpose.msra.mxu0 0
    %398 = vmatprep.subr.bf16.mxu0 0
    %399 = vmatpush2.bf16.xpose.msra.mxu0 0
    %400 = vmatprep.subr.bf16.mxu0 0
    %401 = vmatpush2.bf16.xpose.msra.mxu0 0
    %402 = vmatprep.mubr.bf16.mxu0 0
    %403 = vmatmul.mubr.bf16.gmra.mxu0 %v365
    %v404 = vpop.f32.mrf.mxu0
    %v405 = vadd.f32 0.0, %v404
    %v406 = vpop.f32.mrf.mxu0
    %v407 = vpop.f32.mrf.mxu0
    %v408 = vpop.f32.mrf.mxu0
    %409 = vdwg.mxu0
    %410 = vrot.lane.b32.xlu0 %v135, 120
    %v411 = vpop.permute.xlu0 %410
    %412 = vrot.lane.b32.xlu0 %v135, 88
    %v413 = vpop.permute.xlu0 %412
    %v415 = vsel %vm139, %v411, 0
    %v418 = vsel %vm139, %v413, 0
    %420 = vmatprep.subr.bf16.mxu0 0
    %421 = vmatpush1.bf16.xpose.msra.mxu0 0
    %422 = vmatprep.subr.bf16.mxu0 0
    %423 = vmatpush1.bf16.xpose.msra.mxu0 0
    %424 = vmatprep.subr.bf16.mxu0 0
    %425 = vmatpush1.bf16.xpose.msra.mxu0 0
    %426 = vmatprep.subr.bf16.mxu0 0
    %427 = vmatpush1.bf16.xpose.msra.mxu0 0
    %428 = vmatprep.subr.bf16.mxu0 0
    %429 = vmatpush1.bf16.xpose.msra.mxu0 0
    %430 = vmatprep.subr.bf16.mxu0 0
    %431 = vmatpush1.bf16.xpose.msra.mxu0 0
    %432 = vmatprep.subr.bf16.mxu0 0
    %433 = vmatpush1.bf16.xpose.msra.mxu0 0
    %434 = vmatprep.subr.bf16.mxu0 0
    %435 = vmatpush1.bf16.xpose.msra.mxu0 %v418
    %436 = vmatprep.subr.bf16.mxu0 0
    %437 = vmatpush2.bf16.xpose.msra.mxu0 0
    %438 = vmatprep.subr.bf16.mxu0 0
    %439 = vmatpush2.bf16.xpose.msra.mxu0 0
    %440 = vmatprep.subr.bf16.mxu0 0
    %441 = vmatpush2.bf16.xpose.msra.mxu0 0
    %442 = vmatprep.subr.bf16.mxu0 0
    %443 = vmatpush2.bf16.xpose.msra.mxu0 0
    %444 = vmatprep.subr.bf16.mxu0 0
    %445 = vmatpush2.bf16.xpose.msra.mxu0 0
    %446 = vmatprep.subr.bf16.mxu0 0
    %447 = vmatpush2.bf16.xpose.msra.mxu0 0
    %448 = vmatprep.subr.bf16.mxu0 0
    %449 = vmatpush2.bf16.xpose.msra.mxu0 0
    %450 = vmatprep.subr.bf16.mxu0 0
    %451 = vmatpush2.bf16.xpose.msra.mxu0 0
    %452 = vmatprep.mubr.bf16.mxu0 0
    %453 = vmatmul.mubr.bf16.gmra.mxu0 %v415
    %v454 = vpop.f32.mrf.mxu0
    %v455 = vadd.f32 0.0, %v454
    %v456 = vpop.f32.mrf.mxu0
    %v457 = vpop.f32.mrf.mxu0
    %v458 = vpop.f32.mrf.mxu0
    %459 = vdwg.mxu0
    %v460 = vmul.f32 %v405, 0.35355338
    %v461 = vmul.f32 %v455, 0.35355338
    %v462 = vsel %vm139, %v460, -inf
    %463 = vmax.xlane.f32.xlu0 %v462
    %v464 = vpop.xlane.xlu0 %463
    %v465 = vsel %vm139, %v461, -inf
    %466 = vmax.xlane.f32.xlu0 %v465
    %v467 = vpop.xlane.xlu0 %466
    %v468 = vsub.f32 %v460, %v464
    %v469 = vsub.f32 %v461, %v467
    %v470 = vmul.f32 %v468, 1.442695
    %v471 = vpow.pop %v470
    %v472 = vmul.f32 %v469, 1.442695
    %v473 = vpow.pop %v472
    %v474 = vsel %vm139, %v471, 0.0
    %475 = vadd.xlane.f32.xlu0 %v474
    %v476 = vpop.xlane.xlu0 %475
    %v477 = vsel %vm139, %v473, 0.0
    %478 = vadd.xlane.f32.xlu0 %v477
    %v479 = vpop.xlane.xlu0 %478
    %v480 = vrcp.pop %v476
    %v481 = vrcp.pop %v479
    %v482 = vmul.f32 %v471, %v480
    %v483 = vmul.f32 %v473, %v481
    %v484 = vpack.c.bf16 %v482, %v482
    %v485 = vpack.c.bf16 %v483, %v483
    %486 = vrot.lane.b32.xlu0 %v134, 56
    %v487 = vpop.permute.xlu0 %486
    %v489 = vsel %vm139, %v484, 0
    %v492 = vsel %vm266, %v487, 0
    %494 = vmatprep.subr.bf16.mxu0 0
    %495 = vmatpush1.bf16.msra.mxu0 0
    %496 = vmatprep.subr.bf16.mxu0 0
    %497 = vmatpush1.bf16.msra.mxu0 0
    %498 = vmatprep.subr.bf16.mxu0 0
    %499 = vmatpush1.bf16.msra.mxu0 0
    %500 = vmatprep.subr.bf16.mxu0 0
    %501 = vmatpush1.bf16.msra.mxu0 0
    %502 = vmatprep.subr.bf16.mxu0 0
    %503 = vmatpush1.bf16.msra.mxu0 0
    %504 = vmatprep.subr.bf16.mxu0 0
    %505 = vmatpush1.bf16.msra.mxu0 0
    %506 = vmatprep.subr.bf16.mxu0 0
    %507 = vmatpush1.bf16.msra.mxu0 0
    %508 = vmatprep.subr.bf16.mxu0 0
    %509 = vmatpush1.bf16.msra.mxu0 %v492
    %510 = vmatprep.subr.bf16.mxu0 0
    %511 = vmatpush2.bf16.msra.mxu0 0
    %512 = vmatprep.subr.bf16.mxu0 0
    %513 = vmatpush2.bf16.msra.mxu0 0
    %514 = vmatprep.subr.bf16.mxu0 0
    %515 = vmatpush2.bf16.msra.mxu0 0
    %516 = vmatprep.subr.bf16.mxu0 0
    %517 = vmatpush2.bf16.msra.mxu0 0
    %518 = vmatprep.subr.bf16.mxu0 0
    %519 = vmatpush2.bf16.msra.mxu0 0
    %520 = vmatprep.subr.bf16.mxu0 0
    %521 = vmatpush2.bf16.msra.mxu0 0
    %522 = vmatprep.subr.bf16.mxu0 0
    %523 = vmatpush2.bf16.msra.mxu0 0
    %524 = vmatprep.subr.bf16.mxu0 0
    %525 = vmatpush2.bf16.msra.mxu0 0
    %526 = vmatprep.mubr.bf16.mxu0 0
    %527 = vmatmul.mubr.bf16.gmra.mxu0 %v489
    %v528 = vpop.f32.mrf.mxu0
    %v529 = vadd.f32 0.0, %v528
    %v530 = vpop.f32.mrf.mxu0
    %v531 = vpop.f32.mrf.mxu0
    %v532 = vpop.f32.mrf.mxu0
    %533 = vdwg.mxu0
    %534 = vrot.lane.b32.xlu0 %v135, 56
    %v535 = vpop.permute.xlu0 %534
    %v537 = vsel %vm139, %v485, 0
    %v540 = vsel %vm266, %v535, 0
    %542 = vmatprep.subr.bf16.mxu0 0
    %543 = vmatpush1.bf16.msra.mxu0 0
    %544 = vmatprep.subr.bf16.mxu0 0
    %545 = vmatpush1.bf16.msra.mxu0 0
    %546 = vmatprep.subr.bf16.mxu0 0
    %547 = vmatpush1.bf16.msra.mxu0 0
    %548 = vmatprep.subr.bf16.mxu0 0
    %549 = vmatpush1.bf16.msra.mxu0 0
    %550 = vmatprep.subr.bf16.mxu0 0
    %551 = vmatpush1.bf16.msra.mxu0 0
    %552 = vmatprep.subr.bf16.mxu0 0
    %553 = vmatpush1.bf16.msra.mxu0 0
    %554 = vmatprep.subr.bf16.mxu0 0
    %555 = vmatpush1.bf16.msra.mxu0 0
    %556 = vmatprep.subr.bf16.mxu0 0
    %557 = vmatpush1.bf16.msra.mxu0 %v540
    %558 = vmatprep.subr.bf16.mxu0 0
    %559 = vmatpush2.bf16.msra.mxu0 0
    %560 = vmatprep.subr.bf16.mxu0 0
    %561 = vmatpush2.bf16.msra.mxu0 0
    %562 = vmatprep.subr.bf16.mxu0 0
    %563 = vmatpush2.bf16.msra.mxu0 0
    %564 = vmatprep.subr.bf16.mxu0 0
    %565 = vmatpush2.bf16.msra.mxu0 0
    %566 = vmatprep.subr.bf16.mxu0 0
    %567 = vmatpush2.bf16.msra.mxu0 0
    %568 = vmatprep.subr.bf16.mxu0 0
    %569 = vmatpush2.bf16.msra.mxu0 0
    %570 = vmatprep.subr.bf16.mxu0 0
    %571 = vmatpush2.bf16.msra.mxu0 0
    %572 = vmatprep.subr.bf16.mxu0 0
    %573 = vmatpush2.bf16.msra.mxu0 0
    %574 = vmatprep.mubr.bf16.mxu0 0
    %575 = vmatmul.mubr.bf16.gmra.mxu0 %v537
    %v576 = vpop.f32.mrf.mxu0
    %v577 = vadd.f32 0.0, %v576
    %v578 = vpop.f32.mrf.mxu0
    %v579 = vpop.f32.mrf.mxu0
    %v580 = vpop.f32.mrf.mxu0
    %581 = vdwg.mxu0
    %v582 = vpack.c.bf16 %v577, %v529
    %s583 = scalar_lea.vmem [#allocation7], 4
    %v584 = vld [vmem:[%s583] sm:$0xf]
    %v586 = vsel %vm139, %v582, 0
    %v589 = vsel %vm266, %v584, 0
    %591 = vmatprep.subr.bf16.mxu0 0
    %592 = vmatpush1.bf16.msra.mxu0 0
    %593 = vmatprep.subr.bf16.mxu0 0
    %594 = vmatpush1.bf16.msra.mxu0 0
    %595 = vmatprep.subr.bf16.mxu0 0
    %596 = vmatpush1.bf16.msra.mxu0 0
    %597 = vmatprep.subr.bf16.mxu0 0
    %598 = vmatpush1.bf16.msra.mxu0 0
    %599 = vmatprep.subr.bf16.mxu0 0
    %600 = vmatpush1.bf16.msra.mxu0 0
    %601 = vmatprep.subr.bf16.mxu0 0
    %602 = vmatpush1.bf16.msra.mxu0 0
    %603 = vmatprep.subr.bf16.mxu0 0
    %604 = vmatpush1.bf16.msra.mxu0 0
    %605 = vmatprep.subr.bf16.mxu0 0
    %606 = vmatpush1.bf16.msra.mxu0 %v589
    %607 = vmatprep.subr.bf16.mxu0 0
    %608 = vmatpush2.bf16.msra.mxu0 0
    %609 = vmatprep.subr.bf16.mxu0 0
    %610 = vmatpush2.bf16.msra.mxu0 0
    %611 = vmatprep.subr.bf16.mxu0 0
    %612 = vmatpush2.bf16.msra.mxu0 0
    %613 = vmatprep.subr.bf16.mxu0 0
    %614 = vmatpush2.bf16.msra.mxu0 0
    %615 = vmatprep.subr.bf16.mxu0 0
    %616 = vmatpush2.bf16.msra.mxu0 0
    %617 = vmatprep.subr.bf16.mxu0 0
    %618 = vmatpush2.bf16.msra.mxu0 0
    %619 = vmatprep.subr.bf16.mxu0 0
    %620 = vmatpush2.bf16.msra.mxu0 0
    %621 = vmatprep.subr.bf16.mxu0 0
    %622 = vmatpush2.bf16.msra.mxu0 0
    %623 = vmatprep.mubr.bf16.mxu0 0
    %624 = vmatmul.mubr.bf16.gmra.mxu0 %v586
    %v625 = vpop.f32.mrf.mxu0
    %v626 = vadd.f32 0.0, %v625
    %v627 = vpop.f32.mrf.mxu0
    %v628 = vpop.f32.mrf.mxu0
    %v629 = vadd.f32 0.0, %v628
    %v630 = vpop.f32.mrf.mxu0
    %631 = vdwg.mxu0
    %v633 = vsel %vm139, %v358, 0
    %v636 = vsel %vm266, %v359, 0
    %638 = vmatprep.subr.bf16.mxu0 0
    %639 = vmatpush1.bf16.msra.mxu0 0
    %640 = vmatprep.subr.bf16.mxu0 0
    %641 = vmatpush1.bf16.msra.mxu0 0
    %642 = vmatprep.subr.bf16.mxu0 0
    %643 = vmatpush1.bf16.msra.mxu0 0
    %644 = vmatprep.subr.bf16.mxu0 0
    %645 = vmatpush1.bf16.msra.mxu0 0
    %646 = vmatprep.subr.bf16.mxu0 0
    %647 = vmatpush1.bf16.msra.mxu0 0
    %648 = vmatprep.subr.bf16.mxu0 0
    %649 = vmatpush1.bf16.msra.mxu0 0
    %650 = vmatprep.subr.bf16.mxu0 0
    %651 = vmatpush1.bf16.msra.mxu0 0
    %652 = vmatprep.subr.bf16.mxu0 0
    %653 = vmatpush1.bf16.msra.mxu0 %v636
    %654 = vmatprep.subr.bf16.mxu0 0
    %655 = vmatpush2.bf16.msra.mxu0 0
    %656 = vmatprep.subr.bf16.mxu0 0
    %657 = vmatpush2.bf16.msra.mxu0 0
    %658 = vmatprep.subr.bf16.mxu0 0
    %659 = vmatpush2.bf16.msra.mxu0 0
    %660 = vmatprep.subr.bf16.mxu0 0
    %661 = vmatpush2.bf16.msra.mxu0 0
    %662 = vmatprep.subr.bf16.mxu0 0
    %663 = vmatpush2.bf16.msra.mxu0 0
    %664 = vmatprep.subr.bf16.mxu0 0
    %665 = vmatpush2.bf16.msra.mxu0 0
    %666 = vmatprep.subr.bf16.mxu0 0
    %667 = vmatpush2.bf16.msra.mxu0 0
    %668 = vmatprep.subr.bf16.mxu0 0
    %669 = vmatpush2.bf16.msra.mxu0 0
    %670 = vmatprep.mubr.bf16.mxu0 0
    %671 = vmatmul.mubr.bf16.gmra.mxu0 %v633
    %v672 = vpop.f32.mrf.mxu0
    %v673 = vadd.f32 %v626, %v672
    %v674 = vpop.f32.mrf.mxu0
    %v675 = vpop.f32.mrf.mxu0
    %v676 = vadd.f32 %v629, %v675
    %v677 = vpop.f32.mrf.mxu0
    %678 = vdwg.mxu0
    %679 = vrot.lane.b32.xlu0 %v134, 112
    %v680 = vpop.permute.xlu0 %679
    %681 = vrot.lane.b32.xlu0 %v134, 80
    %v682 = vpop.permute.xlu0 %681
    %v684 = vsel %vm139, %v680, 0
    %v687 = vsel %vm139, %v682, 0
    %689 = vmatprep.subr.bf16.mxu0 0
    %690 = vmatpush1.bf16.xpose.msra.mxu0 0
    %691 = vmatprep.subr.bf16.mxu0 0
    %692 = vmatpush1.bf16.xpose.msra.mxu0 0
    %693 = vmatprep.subr.bf16.mxu0 0
    %694 = vmatpush1.bf16.xpose.msra.mxu0 0
    %695 = vmatprep.subr.bf16.mxu0 0
    %696 = vmatpush1.bf16.xpose.msra.mxu0 0
    %697 = vmatprep.subr.bf16.mxu0 0
    %698 = vmatpush1.bf16.xpose.msra.mxu0 0
    %699 = vmatprep.subr.bf16.mxu0 0
    %700 = vmatpush1.bf16.xpose.msra.mxu0 0
    %701 = vmatprep.subr.bf16.mxu0 0
    %702 = vmatpush1.bf16.xpose.msra.mxu0 0
    %703 = vmatprep.subr.bf16.mxu0 0
    %704 = vmatpush1.bf16.xpose.msra.mxu0 %v687
    %705 = vmatprep.subr.bf16.mxu0 0
    %706 = vmatpush2.bf16.xpose.msra.mxu0 0
    %707 = vmatprep.subr.bf16.mxu0 0
    %708 = vmatpush2.bf16.xpose.msra.mxu0 0
    %709 = vmatprep.subr.bf16.mxu0 0
    %710 = vmatpush2.bf16.xpose.msra.mxu0 0
    %711 = vmatprep.subr.bf16.mxu0 0
    %712 = vmatpush2.bf16.xpose.msra.mxu0 0
    %713 = vmatprep.subr.bf16.mxu0 0
    %714 = vmatpush2.bf16.xpose.msra.mxu0 0
    %715 = vmatprep.subr.bf16.mxu0 0
    %716 = vmatpush2.bf16.xpose.msra.mxu0 0
    %717 = vmatprep.subr.bf16.mxu0 0
    %718 = vmatpush2.bf16.xpose.msra.mxu0 0
    %719 = vmatprep.subr.bf16.mxu0 0
    %720 = vmatpush2.bf16.xpose.msra.mxu0 0
    %721 = vmatprep.mubr.bf16.mxu0 0
    %722 = vmatmul.mubr.bf16.gmra.mxu0 %v684
    %v723 = vpop.f32.mrf.mxu0
    %v724 = vadd.f32 0.0, %v723
    %v725 = vpop.f32.mrf.mxu0
    %v726 = vpop.f32.mrf.mxu0
    %v727 = vpop.f32.mrf.mxu0
    %728 = vdwg.mxu0
    %729 = vrot.lane.b32.xlu0 %v135, 112
    %v730 = vpop.permute.xlu0 %729
    %731 = vrot.lane.b32.xlu0 %v135, 80
    %v732 = vpop.permute.xlu0 %731
    %v734 = vsel %vm139, %v730, 0
    %v737 = vsel %vm139, %v732, 0
    %739 = vmatprep.subr.bf16.mxu0 0
    %740 = vmatpush1.bf16.xpose.msra.mxu0 0
    %741 = vmatprep.subr.bf16.mxu0 0
    %742 = vmatpush1.bf16.xpose.msra.mxu0 0
    %743 = vmatprep.subr.bf16.mxu0 0
    %744 = vmatpush1.bf16.xpose.msra.mxu0 0
    %745 = vmatprep.subr.bf16.mxu0 0
    %746 = vmatpush1.bf16.xpose.msra.mxu0 0
    %747 = vmatprep.subr.bf16.mxu0 0
    %748 = vmatpush1.bf16.xpose.msra.mxu0 0
    %749 = vmatprep.subr.bf16.mxu0 0
    %750 = vmatpush1.bf16.xpose.msra.mxu0 0
    %751 = vmatprep.subr.bf16.mxu0 0
    %752 = vmatpush1.bf16.xpose.msra.mxu0 0
    %753 = vmatprep.subr.bf16.mxu0 0
    %754 = vmatpush1.bf16.xpose.msra.mxu0 %v737
    %755 = vmatprep.subr.bf16.mxu0 0
    %756 = vmatpush2.bf16.xpose.msra.mxu0 0
    %757 = vmatprep.subr.bf16.mxu0 0
    %758 = vmatpush2.bf16.xpose.msra.mxu0 0
    %759 = vmatprep.subr.bf16.mxu0 0
    %760 = vmatpush2.bf16.xpose.msra.mxu0 0
    %761 = vmatprep.subr.bf16.mxu0 0
    %762 = vmatpush2.bf16.xpose.msra.mxu0 0
    %763 = vmatprep.subr.bf16.mxu0 0
    %764 = vmatpush2.bf16.xpose.msra.mxu0 0
    %765 = vmatprep.subr.bf16.mxu0 0
    %766 = vmatpush2.bf16.xpose.msra.mxu0 0
    %767 = vmatprep.subr.bf16.mxu0 0
    %768 = vmatpush2.bf16.xpose.msra.mxu0 0
    %769 = vmatprep.subr.bf16.mxu0 0
    %770 = vmatpush2.bf16.xpose.msra.mxu0 0
    %771 = vmatprep.mubr.bf16.mxu0 0
    %772 = vmatmul.mubr.bf16.gmra.mxu0 %v734
    %v773 = vpop.f32.mrf.mxu0
    %v774 = vadd.f32 0.0, %v773
    %v775 = vpop.f32.mrf.mxu0
    %v776 = vpop.f32.mrf.mxu0
    %v777 = vpop.f32.mrf.mxu0
    %778 = vdwg.mxu0
    %v779 = vmul.f32 %v724, 0.35355338
    %v780 = vmul.f32 %v774, 0.35355338
    %v781 = vsel %vm139, %v779, -inf
    %782 = vmax.xlane.f32.xlu0 %v781
    %v783 = vpop.xlane.xlu0 %782
    %v784 = vsel %vm139, %v780, -inf
    %785 = vmax.xlane.f32.xlu0 %v784
    %v786 = vpop.xlane.xlu0 %785
    %v787 = vsub.f32 %v779, %v783
    %v788 = vsub.f32 %v780, %v786
    %v789 = vmul.f32 %v787, 1.442695
    %v790 = vpow.pop %v789
    %v791 = vmul.f32 %v788, 1.442695
    %v792 = vpow.pop %v791
    %v793 = vsel %vm139, %v790, 0.0
    %794 = vadd.xlane.f32.xlu0 %v793
    %v795 = vpop.xlane.xlu0 %794
    %v796 = vsel %vm139, %v792, 0.0
    %797 = vadd.xlane.f32.xlu0 %v796
    %v798 = vpop.xlane.xlu0 %797
    %v799 = vrcp.pop %v795
    %v800 = vrcp.pop %v798
    %v801 = vmul.f32 %v790, %v799
    %v802 = vmul.f32 %v792, %v800
    %v803 = vpack.c.bf16 %v801, %v801
    %v804 = vpack.c.bf16 %v802, %v802
    %805 = vrot.lane.b32.xlu0 %v134, 48
    %v806 = vpop.permute.xlu0 %805
    %v808 = vsel %vm139, %v803, 0
    %v811 = vsel %vm266, %v806, 0
    %813 = vmatprep.subr.bf16.mxu0 0
    %814 = vmatpush1.bf16.msra.mxu0 0
    %815 = vmatprep.subr.bf16.mxu0 0
    %816 = vmatpush1.bf16.msra.mxu0 0
    %817 = vmatprep.subr.bf16.mxu0 0
    %818 = vmatpush1.bf16.msra.mxu0 0
    %819 = vmatprep.subr.bf16.mxu0 0
    %820 = vmatpush1.bf16.msra.mxu0 0
    %821 = vmatprep.subr.bf16.mxu0 0
    %822 = vmatpush1.bf16.msra.mxu0 0
    %823 = vmatprep.subr.bf16.mxu0 0
    %824 = vmatpush1.bf16.msra.mxu0 0
    %825 = vmatprep.subr.bf16.mxu0 0
    %826 = vmatpush1.bf16.msra.mxu0 0
    %827 = vmatprep.subr.bf16.mxu0 0
    %828 = vmatpush1.bf16.msra.mxu0 %v811
    %829 = vmatprep.subr.bf16.mxu0 0
    %830 = vmatpush2.bf16.msra.mxu0 0
    %831 = vmatprep.subr.bf16.mxu0 0
    %832 = vmatpush2.bf16.msra.mxu0 0
    %833 = vmatprep.subr.bf16.mxu0 0
    %834 = vmatpush2.bf16.msra.mxu0 0
    %835 = vmatprep.subr.bf16.mxu0 0
    %836 = vmatpush2.bf16.msra.mxu0 0
    %837 = vmatprep.subr.bf16.mxu0 0
    %838 = vmatpush2.bf16.msra.mxu0 0
    %839 = vmatprep.subr.bf16.mxu0 0
    %840 = vmatpush2.bf16.msra.mxu0 0
    %841 = vmatprep.subr.bf16.mxu0 0
    %842 = vmatpush2.bf16.msra.mxu0 0
    %843 = vmatprep.subr.bf16.mxu0 0
    %844 = vmatpush2.bf16.msra.mxu0 0
    %845 = vmatprep.mubr.bf16.mxu0 0
    %846 = vmatmul.mubr.bf16.gmra.mxu0 %v808
    %v847 = vpop.f32.mrf.mxu0
    %v848 = vadd.f32 0.0, %v847
    %v849 = vpop.f32.mrf.mxu0
    %v850 = vpop.f32.mrf.mxu0
    %v851 = vpop.f32.mrf.mxu0
    %852 = vdwg.mxu0
    %853 = vrot.lane.b32.xlu0 %v135, 48
    %v854 = vpop.permute.xlu0 %853
    %v856 = vsel %vm139, %v804, 0
    %v859 = vsel %vm266, %v854, 0
    %861 = vmatprep.subr.bf16.mxu0 0
    %862 = vmatpush1.bf16.msra.mxu0 0
    %863 = vmatprep.subr.bf16.mxu0 0
    %864 = vmatpush1.bf16.msra.mxu0 0
    %865 = vmatprep.subr.bf16.mxu0 0
    %866 = vmatpush1.bf16.msra.mxu0 0
    %867 = vmatprep.subr.bf16.mxu0 0
    %868 = vmatpush1.bf16.msra.mxu0 0
    %869 = vmatprep.subr.bf16.mxu0 0
    %870 = vmatpush1.bf16.msra.mxu0 0
    %871 = vmatprep.subr.bf16.mxu0 0
    %872 = vmatpush1.bf16.msra.mxu0 0
    %873 = vmatprep.subr.bf16.mxu0 0
    %874 = vmatpush1.bf16.msra.mxu0 0
    %875 = vmatprep.subr.bf16.mxu0 0
    %876 = vmatpush1.bf16.msra.mxu0 %v859
    %877 = vmatprep.subr.bf16.mxu0 0
    %878 = vmatpush2.bf16.msra.mxu0 0
    %879 = vmatprep.subr.bf16.mxu0 0
    %880 = vmatpush2.bf16.msra.mxu0 0
    %881 = vmatprep.subr.bf16.mxu0 0
    %882 = vmatpush2.bf16.msra.mxu0 0
    %883 = vmatprep.subr.bf16.mxu0 0
    %884 = vmatpush2.bf16.msra.mxu0 0
    %885 = vmatprep.subr.bf16.mxu0 0
    %886 = vmatpush2.bf16.msra.mxu0 0
    %887 = vmatprep.subr.bf16.mxu0 0
    %888 = vmatpush2.bf16.msra.mxu0 0
    %889 = vmatprep.subr.bf16.mxu0 0
    %890 = vmatpush2.bf16.msra.mxu0 0
    %891 = vmatprep.subr.bf16.mxu0 0
    %892 = vmatpush2.bf16.msra.mxu0 0
    %893 = vmatprep.mubr.bf16.mxu0 0
    %894 = vmatmul.mubr.bf16.gmra.mxu0 %v856
    %v895 = vpop.f32.mrf.mxu0
    %v896 = vadd.f32 0.0, %v895
    %v897 = vpop.f32.mrf.mxu0
    %v898 = vpop.f32.mrf.mxu0
    %v899 = vpop.f32.mrf.mxu0
    %900 = vdwg.mxu0
    %v901 = vpack.c.bf16 %v896, %v848
    %s902 = scalar_lea.vmem [#allocation7], 8
    %v903 = vld [vmem:[%s902] sm:$0xf]
    %v905 = vsel %vm139, %v901, 0
    %v908 = vsel %vm266, %v903, 0
    %910 = vmatprep.subr.bf16.mxu0 0
    %911 = vmatpush1.bf16.msra.mxu0 0
    %912 = vmatprep.subr.bf16.mxu0 0
    %913 = vmatpush1.bf16.msra.mxu0 0
    %914 = vmatprep.subr.bf16.mxu0 0
    %915 = vmatpush1.bf16.msra.mxu0 0
    %916 = vmatprep.subr.bf16.mxu0 0
    %917 = vmatpush1.bf16.msra.mxu0 0
    %918 = vmatprep.subr.bf16.mxu0 0
    %919 = vmatpush1.bf16.msra.mxu0 0
    %920 = vmatprep.subr.bf16.mxu0 0
    %921 = vmatpush1.bf16.msra.mxu0 0
    %922 = vmatprep.subr.bf16.mxu0 0
    %923 = vmatpush1.bf16.msra.mxu0 0
    %924 = vmatprep.subr.bf16.mxu0 0
    %925 = vmatpush1.bf16.msra.mxu0 %v908
    %926 = vmatprep.subr.bf16.mxu0 0
    %927 = vmatpush2.bf16.msra.mxu0 0
    %928 = vmatprep.subr.bf16.mxu0 0
    %929 = vmatpush2.bf16.msra.mxu0 0
    %930 = vmatprep.subr.bf16.mxu0 0
    %931 = vmatpush2.bf16.msra.mxu0 0
    %932 = vmatprep.subr.bf16.mxu0 0
    %933 = vmatpush2.bf16.msra.mxu0 0
    %934 = vmatprep.subr.bf16.mxu0 0
    %935 = vmatpush2.bf16.msra.mxu0 0
    %936 = vmatprep.subr.bf16.mxu0 0
    %937 = vmatpush2.bf16.msra.mxu0 0
    %938 = vmatprep.subr.bf16.mxu0 0
    %939 = vmatpush2.bf16.msra.mxu0 0
    %940 = vmatprep.subr.bf16.mxu0 0
    %941 = vmatpush2.bf16.msra.mxu0 0
    %942 = vmatprep.mubr.bf16.mxu0 0
    %943 = vmatmul.mubr.bf16.gmra.mxu0 %v905
    %v944 = vpop.f32.mrf.mxu0
    %v945 = vadd.f32 0.0, %v944
    %v946 = vpop.f32.mrf.mxu0
    %v947 = vpop.f32.mrf.mxu0
    %v948 = vadd.f32 0.0, %v947
    %v949 = vpop.f32.mrf.mxu0
    %950 = vdwg.mxu0
    %v951 = vadd.f32 %v673, %v945
    %v952 = vadd.f32 %v676, %v948
    %953 = vrot.lane.b32.xlu0 %v134, 104
    %v954 = vpop.permute.xlu0 %953
    %955 = vrot.lane.b32.xlu0 %v134, 72
    %v956 = vpop.permute.xlu0 %955
    %v958 = vsel %vm139, %v954, 0
    %v961 = vsel %vm139, %v956, 0
    %963 = vmatprep.subr.bf16.mxu0 0
    %964 = vmatpush1.bf16.xpose.msra.mxu0 0
    %965 = vmatprep.subr.bf16.mxu0 0
    %966 = vmatpush1.bf16.xpose.msra.mxu0 0
    %967 = vmatprep.subr.bf16.mxu0 0
    %968 = vmatpush1.bf16.xpose.msra.mxu0 0
    %969 = vmatprep.subr.bf16.mxu0 0
    %970 = vmatpush1.bf16.xpose.msra.mxu0 0
    %971 = vmatprep.subr.bf16.mxu0 0
    %972 = vmatpush1.bf16.xpose.msra.mxu0 0
    %973 = vmatprep.subr.bf16.mxu0 0
    %974 = vmatpush1.bf16.xpose.msra.mxu0 0
    %975 = vmatprep.subr.bf16.mxu0 0
    %976 = vmatpush1.bf16.xpose.msra.mxu0 0
    %977 = vmatprep.subr.bf16.mxu0 0
    %978 = vmatpush1.bf16.xpose.msra.mxu0 %v961
    %979 = vmatprep.subr.bf16.mxu0 0
    %980 = vmatpush2.bf16.xpose.msra.mxu0 0
    %981 = vmatprep.subr.bf16.mxu0 0
    %982 = vmatpush2.bf16.xpose.msra.mxu0 0
    %983 = vmatprep.subr.bf16.mxu0 0
    %984 = vmatpush2.bf16.xpose.msra.mxu0 0
    %985 = vmatprep.subr.bf16.mxu0 0
    %986 = vmatpush2.bf16.xpose.msra.mxu0 0
    %987 = vmatprep.subr.bf16.mxu0 0
    %988 = vmatpush2.bf16.xpose.msra.mxu0 0
    %989 = vmatprep.subr.bf16.mxu0 0
    %990 = vmatpush2.bf16.xpose.msra.mxu0 0
    %991 = vmatprep.subr.bf16.mxu0 0
    %992 = vmatpush2.bf16.xpose.msra.mxu0 0
    %993 = vmatprep.subr.bf16.mxu0 0
    %994 = vmatpush2.bf16.xpose.msra.mxu0 0
    %995 = vmatprep.mubr.bf16.mxu0 0
    %996 = vmatmul.mubr.bf16.gmra.mxu0 %v958
    %v997 = vpop.f32.mrf.mxu0
    %v998 = vadd.f32 0.0, %v997
    %v999 = vpop.f32.mrf.mxu0
    %v1000 = vpop.f32.mrf.mxu0
    %v1001 = vpop.f32.mrf.mxu0
    %1002 = vdwg.mxu0
    %1003 = vrot.lane.b32.xlu0 %v135, 104
    %v1004 = vpop.permute.xlu0 %1003
    %1005 = vrot.lane.b32.xlu0 %v135, 72
    %v1006 = vpop.permute.xlu0 %1005
    %v1008 = vsel %vm139, %v1004, 0
    %v1011 = vsel %vm139, %v1006, 0
    %1013 = vmatprep.subr.bf16.mxu0 0
    %1014 = vmatpush1.bf16.xpose.msra.mxu0 0
    %1015 = vmatprep.subr.bf16.mxu0 0
    %1016 = vmatpush1.bf16.xpose.msra.mxu0 0
    %1017 = vmatprep.subr.bf16.mxu0 0
    %1018 = vmatpush1.bf16.xpose.msra.mxu0 0
    %1019 = vmatprep.subr.bf16.mxu0 0
    %1020 = vmatpush1.bf16.xpose.msra.mxu0 0
    %1021 = vmatprep.subr.bf16.mxu0 0
    %1022 = vmatpush1.bf16.xpose.msra.mxu0 0
    %1023 = vmatprep.subr.bf16.mxu0 0
    %1024 = vmatpush1.bf16.xpose.msra.mxu0 0
    %1025 = vmatprep.subr.bf16.mxu0 0
    %1026 = vmatpush1.bf16.xpose.msra.mxu0 0
    %1027 = vmatprep.subr.bf16.mxu0 0
    %1028 = vmatpush1.bf16.xpose.msra.mxu0 %v1011
    %1029 = vmatprep.subr.bf16.mxu0 0
    %1030 = vmatpush2.bf16.xpose.msra.mxu0 0
    %1031 = vmatprep.subr.bf16.mxu0 0
    %1032 = vmatpush2.bf16.xpose.msra.mxu0 0
    %1033 = vmatprep.subr.bf16.mxu0 0
    %1034 = vmatpush2.bf16.xpose.msra.mxu0 0
    %1035 = vmatprep.subr.bf16.mxu0 0
    %1036 = vmatpush2.bf16.xpose.msra.mxu0 0
    %1037 = vmatprep.subr.bf16.mxu0 0
    %1038 = vmatpush2.bf16.xpose.msra.mxu0 0
    %1039 = vmatprep.subr.bf16.mxu0 0
    %1040 = vmatpush2.bf16.xpose.msra.mxu0 0
    %1041 = vmatprep.subr.bf16.mxu0 0
    %1042 = vmatpush2.bf16.xpose.msra.mxu0 0
    %1043 = vmatprep.subr.bf16.mxu0 0
    %1044 = vmatpush2.bf16.xpose.msra.mxu0 0
    %1045 = vmatprep.mubr.bf16.mxu0 0
    %1046 = vmatmul.mubr.bf16.gmra.mxu0 %v1008
    %v1047 = vpop.f32.mrf.mxu0
    %v1048 = vadd.f32 0.0, %v1047
    %v1049 = vpop.f32.mrf.mxu0
    %v1050 = vpop.f32.mrf.mxu0
    %v1051 = vpop.f32.mrf.mxu0
    %1052 = vdwg.mxu0
    %v1053 = vmul.f32 %v998, 0.35355338
    %v1054 = vmul.f32 %v1048, 0.35355338
    %v1055 = vsel %vm139, %v1053, -inf
    %1056 = vmax.xlane.f32.xlu0 %v1055
    %v1057 = vpop.xlane.xlu0 %1056
    %v1058 = vsel %vm139, %v1054, -inf
    %1059 = vmax.xlane.f32.xlu0 %v1058
    %v1060 = vpop.xlane.xlu0 %1059
    %v1061 = vsub.f32 %v1053, %v1057
    %v1062 = vsub.f32 %v1054, %v1060
    %v1063 = vmul.f32 %v1061, 1.442695
    %v1064 = vpow.pop %v1063
    %v1065 = vmul.f32 %v1062, 1.442695
    %v1066 = vpow.pop %v1065
    %v1067 = vsel %vm139, %v1064, 0.0
    %1068 = vadd.xlane.f32.xlu0 %v1067
    %v1069 = vpop.xlane.xlu0 %1068
    %v1070 = vsel %vm139, %v1066, 0.0
    %1071 = vadd.xlane.f32.xlu0 %v1070
    %v1072 = vpop.xlane.xlu0 %1071
    %v1073 = vrcp.pop %v1069
    %v1074 = vrcp.pop %v1072
    %v1075 = vmul.f32 %v1064, %v1073
    %v1076 = vmul.f32 %v1066, %v1074
    %v1077 = vpack.c.bf16 %v1075, %v1075
    %v1078 = vpack.c.bf16 %v1076, %v1076
    %1079 = vrot.lane.b32.xlu0 %v134, 40
    %v1080 = vpop.permute.xlu0 %1079
    %v1082 = vsel %vm139, %v1077, 0
    %v1085 = vsel %vm266, %v1080, 0
    %1087 = vmatprep.subr.bf16.mxu0 0
    %1088 = vmatpush1.bf16.msra.mxu0 0
    %1089 = vmatprep.subr.bf16.mxu0 0
    %1090 = vmatpush1.bf16.msra.mxu0 0
    %1091 = vmatprep.subr.bf16.mxu0 0
    %1092 = vmatpush1.bf16.msra.mxu0 0
    %1093 = vmatprep.subr.bf16.mxu0 0
    %1094 = vmatpush1.bf16.msra.mxu0 0
    %1095 = vmatprep.subr.bf16.mxu0 0
    %1096 = vmatpush1.bf16.msra.mxu0 0
    %1097 = vmatprep.subr.bf16.mxu0 0
    %1098 = vmatpush1.bf16.msra.mxu0 0
    %1099 = vmatprep.subr.bf16.mxu0 0
    %1100 = vmatpush1.bf16.msra.mxu0 0
    %1101 = vmatprep.subr.bf16.mxu0 0
    %1102 = vmatpush1.bf16.msra.mxu0 %v1085
    %1103 = vmatprep.subr.bf16.mxu0 0
    %1104 = vmatpush2.bf16.msra.mxu0 0
    %1105 = vmatprep.subr.bf16.mxu0 0
    %1106 = vmatpush2.bf16.msra.mxu0 0
    %1107 = vmatprep.subr.bf16.mxu0 0
    %1108 = vmatpush2.bf16.msra.mxu0 0
    %1109 = vmatprep.subr.bf16.mxu0 0
    %1110 = vmatpush2.bf16.msra.mxu0 0
    %1111 = vmatprep.subr.bf16.mxu0 0
    %1112 = vmatpush2.bf16.msra.mxu0 0
    %1113 = vmatprep.subr.bf16.mxu0 0
    %1114 = vmatpush2.bf16.msra.mxu0 0
    %1115 = vmatprep.subr.bf16.mxu0 0
    %1116 = vmatpush2.bf16.msra.mxu0 0
    %1117 = vmatprep.subr.bf16.mxu0 0
    %1118 = vmatpush2.bf16.msra.mxu0 0
    %1119 = vmatprep.mubr.bf16.mxu0 0
    %1120 = vmatmul.mubr.bf16.gmra.mxu0 %v1082
    %v1121 = vpop.f32.mrf.mxu0
    %v1122 = vadd.f32 0.0, %v1121
    %v1123 = vpop.f32.mrf.mxu0
    %v1124 = vpop.f32.mrf.mxu0
    %v1125 = vpop.f32.mrf.mxu0
    %1126 = vdwg.mxu0
    %1127 = vrot.lane.b32.xlu0 %v135, 40
    %v1128 = vpop.permute.xlu0 %1127
    %v1130 = vsel %vm139, %v1078, 0
    %v1133 = vsel %vm266, %v1128, 0
    %1135 = vmatprep.subr.bf16.mxu0 0
    %1136 = vmatpush1.bf16.msra.mxu0 0
    %1137 = vmatprep.subr.bf16.mxu0 0
    %1138 = vmatpush1.bf16.msra.mxu0 0
    %1139 = vmatprep.subr.bf16.mxu0 0
    %1140 = vmatpush1.bf16.msra.mxu0 0
    %1141 = vmatprep.subr.bf16.mxu0 0
    %1142 = vmatpush1.bf16.msra.mxu0 0
    %1143 = vmatprep.subr.bf16.mxu0 0
    %1144 = vmatpush1.bf16.msra.mxu0 0
    %1145 = vmatprep.subr.bf16.mxu0 0
    %1146 = vmatpush1.bf16.msra.mxu0 0
    %1147 = vmatprep.subr.bf16.mxu0 0
    %1148 = vmatpush1.bf16.msra.mxu0 0
    %1149 = vmatprep.subr.bf16.mxu0 0
    %1150 = vmatpush1.bf16.msra.mxu0 %v1133
    %1151 = vmatprep.subr.bf16.mxu0 0
    %1152 = vmatpush2.bf16.msra.mxu0 0
    %1153 = vmatprep.subr.bf16.mxu0 0
    %1154 = vmatpush2.bf16.msra.mxu0 0
    %1155 = vmatprep.subr.bf16.mxu0 0
    %1156 = vmatpush2.bf16.msra.mxu0 0
    %1157 = vmatprep.subr.bf16.mxu0 0
    %1158 = vmatpush2.bf16.msra.mxu0 0
    %1159 = vmatprep.subr.bf16.mxu0 0
    %1160 = vmatpush2.bf16.msra.mxu0 0
    %1161 = vmatprep.subr.bf16.mxu0 0
    %1162 = vmatpush2.bf16.msra.mxu0 0
    %1163 = vmatprep.subr.bf16.mxu0 0
    %1164 = vmatpush2.bf16.msra.mxu0 0
    %1165 = vmatprep.subr.bf16.mxu0 0
    %1166 = vmatpush2.bf16.msra.mxu0 0
    %1167 = vmatprep.mubr.bf16.mxu0 0
    %1168 = vmatmul.mubr.bf16.gmra.mxu0 %v1130
    %v1169 = vpop.f32.mrf.mxu0
    %v1170 = vadd.f32 0.0, %v1169
    %v1171 = vpop.f32.mrf.mxu0
    %v1172 = vpop.f32.mrf.mxu0
    %v1173 = vpop.f32.mrf.mxu0
    %1174 = vdwg.mxu0
    %v1175 = vpack.c.bf16 %v1170, %v1122
    %s1176 = scalar_lea.vmem [#allocation7], 12
    %v1177 = vld [vmem:[%s1176] sm:$0xf]
    %v1179 = vsel %vm139, %v1175, 0
    %v1182 = vsel %vm266, %v1177, 0
    %1184 = vmatprep.subr.bf16.mxu0 0
    %1185 = vmatpush1.bf16.msra.mxu0 0
    %1186 = vmatprep.subr.bf16.mxu0 0
    %1187 = vmatpush1.bf16.msra.mxu0 0
    %1188 = vmatprep.subr.bf16.mxu0 0
    %1189 = vmatpush1.bf16.msra.mxu0 0
    %1190 = vmatprep.subr.bf16.mxu0 0
    %1191 = vmatpush1.bf16.msra.mxu0 0
    %1192 = vmatprep.subr.bf16.mxu0 0
    %1193 = vmatpush1.bf16.msra.mxu0 0
    %1194 = vmatprep.subr.bf16.mxu0 0
    %1195 = vmatpush1.bf16.msra.mxu0 0
    %1196 = vmatprep.subr.bf16.mxu0 0
    %1197 = vmatpush1.bf16.msra.mxu0 0
    %1198 = vmatprep.subr.bf16.mxu0 0
    %1199 = vmatpush1.bf16.msra.mxu0 %v1182
    %1200 = vmatprep.subr.bf16.mxu0 0
    %1201 = vmatpush2.bf16.msra.mxu0 0
    %1202 = vmatprep.subr.bf16.mxu0 0
    %1203 = vmatpush2.bf16.msra.mxu0 0
    %1204 = vmatprep.subr.bf16.mxu0 0
    %1205 = vmatpush2.bf16.msra.mxu0 0
    %1206 = vmatprep.subr.bf16.mxu0 0
    %1207 = vmatpush2.bf16.msra.mxu0 0
    %1208 = vmatprep.subr.bf16.mxu0 0
    %1209 = vmatpush2.bf16.msra.mxu0 0
    %1210 = vmatprep.subr.bf16.mxu0 0
    %1211 = vmatpush2.bf16.msra.mxu0 0
    %1212 = vmatprep.subr.bf16.mxu0 0
    %1213 = vmatpush2.bf16.msra.mxu0 0
    %1214 = vmatprep.subr.bf16.mxu0 0
    %1215 = vmatpush2.bf16.msra.mxu0 0
    %1216 = vmatprep.mubr.bf16.mxu0 0
    %1217 = vmatmul.mubr.bf16.gmra.mxu0 %v1179
    %v1218 = vpop.f32.mrf.mxu0
    %v1219 = vadd.f32 0.0, %v1218
    %v1220 = vpop.f32.mrf.mxu0
    %v1221 = vpop.f32.mrf.mxu0
    %v1222 = vadd.f32 0.0, %v1221
    %v1223 = vpop.f32.mrf.mxu0
    %1224 = vdwg.mxu0
    %v1225 = vadd.f32 %v951, %v1219
    %v1226 = vadd.f32 %v952, %v1222
    %v1227 = vld [vmem:[%s4] sm:$0x1]
    %v1229 = vlaneseq
    %v1230 = vshrl.u32 %v1229, 7
    %v1231 = vsub.s32 0, %v1230
    %v1232 = vrot.slane %v1227, %v1231
    %v1234 = vadd.f32 %v1225, %v1232
    %v1235 = vadd.f32 %v1226, %v1232
    %1236 = vst.msk [vmem:[#allocation8] sm:$0xff] %vm89, %v1234
    %1237 = vst.msk [vmem:[#allocation8 + $0x8] sm:$0xff] %vm89, %v1235
    // Predicated region
    $region34: #{tpu_custom_call.1} parent=1 // pred_check
      _
    $region35: #{tpu_custom_call.1} parent=1 // pred_check_branch
      %1239 = sbr.rel (0) target = $region37
    $region36: #{tpu_custom_call.1} parent=1 // pred_region
      %s1241 = ssub.s32 256, 256
      %1242 = vsyncadd [#allocation4], %s1241
      %s1243 = sshll.u32 [#allocation8], 4
      %s1244 = int_to_ptr.vmem [resolvable:$true] %s1243
      %1249 = dma.vmem_to_hbm [thread:$0]  %s1244, 256, %s5, [#allocation4], 128, 128, 8
    $region37: #{tpu_custom_call.1} parent=1 // pred_fallthru
      _
    // Predicated region
    $region38: #{tpu_custom_call.1} parent=1 // pred_check
      _
    $region39: #{tpu_custom_call.1} parent=1 // pred_check_branch
      %1251 = sbr.rel (0) target = $region41
    $region40: #{tpu_custom_call.1} parent=1 // pred_region
      %1252 = dma.done [#allocation4], 256
    $region41: #{tpu_custom_call.1} parent=1 // pred_fallthru
      _
    %1253 = vsyncpa [#allocation3], 1
    %1254 = vsyncpa [#allocation6], 1
    %1255 = vsyncpa [#allocation4], 1

</llo_original>
